<compile_context>
chip_gen: v5e
topology: v5e:2x2
jax: 0.10.0
libtpu: 0.0.40
codegen_flags: <defaults>
</compile_context>

<pallas_src>
import functools
import math

import jax
import jax.numpy as jnp
from jax import lax
from jax.experimental import pallas as pl
from jax.experimental.pallas import tpu as pltpu


# ---------------------------------------------------------------------------
# Fused kernel: QKV projection + multi-head softmax attention + residual add
# ---------------------------------------------------------------------------
def _attention_block_kernel(x_ref, w_ref, b_ref, o_ref, qkv_ref, *,
                            num_heads, scale):
    # x_ref: (1, C, S) channels-major image (also the residual)
    # w_ref: (3C, C) PyTorch nn.Linear layout; b_ref: (3C, 1); o_ref: (1, C, S)
    # qkv_ref: (3C, S) f32 VMEM scratch holding the projected q|k|v rows.
    C = x_ref.shape[1]
    hd = C // num_heads

    # ---- QKV projection: bf16 MXU operands, f32 accumulation, f32 bias add ----
    x_bf = x_ref[0].astype(jnp.bfloat16)                      # (C, S)
    w_bf = w_ref[...].astype(jnp.bfloat16)                    # (3C, C)
    qkv = jnp.dot(w_bf, x_bf, preferred_element_type=jnp.float32)   # (3C, S) f32
    qkv_ref[...] = qkv + b_ref[...]                           # (3C,1) lane-broadcast

    # ---- per-head attention: real loop -> one head's (S,S) temps live at a time
    def head_body(h, carry):
        q_off = pl.multiple_of(h * hd, 8)
        k_off = pl.multiple_of(C + h * hd, 8)
        v_off = pl.multiple_of(2 * C + h * hd, 8)

        q = qkv_ref[pl.ds(q_off, hd), :]                      # (hd, S) f32
        k = qkv_ref[pl.ds(k_off, hd), :]                      # (hd, S) f32
        v = qkv_ref[pl.ds(v_off, hd), :]                      # (hd, S) f32

        # fold the 1/sqrt(hd) scale into the tiny q tile, then go bf16 for MXU
        q_t = jnp.transpose(q * scale).astype(jnp.bfloat16)   # (S, hd) bf16
        k_bf = k.astype(jnp.bfloat16)                         # (hd, S) bf16

        # scores: queries on sublanes -> softmax reduction is along lanes
        s = jnp.dot(q_t, k_bf, preferred_element_type=jnp.float32)   # (S, S) f32

        # numerically stable softmax, normalization deferred past the PV matmul
        s = s - jnp.max(s, axis=-1, keepdims=True)
        p = jnp.exp(s)                                        # unnormalized, f32
        denom = jnp.sum(p, axis=-1, keepdims=True)            # (S, 1) f32

        # PV in the standard NN pattern (no 256x256 transpose of p):
        # (S, S) @ (S, hd) -> (S, hd), bf16 operands, f32 accumulation
        v_t = jnp.transpose(v).astype(jnp.bfloat16)           # (S, hd) bf16
        out_q = jnp.dot(p.astype(jnp.bfloat16), v_t,
                        preferred_element_type=jnp.float32)   # (S, hd) f32

        # deferred softmax normalization on the small output tile (EUP reciprocal)
        out_q = out_q * pl.reciprocal(denom, approx=True)     # (S, hd) f32

        # back to channels-major, residual add in f32, direct per-head store
        res = x_ref[0, pl.ds(q_off, hd), :]                   # (hd, S) f32
        o_ref[0, pl.ds(q_off, hd), :] = (
            jnp.transpose(out_q) + res).astype(o_ref.dtype)
        return carry

    lax.fori_loop(0, num_heads, head_body, 0)


# ---------------------------------------------------------------------------
# Wrapper: single pallas_call over the batch
# ---------------------------------------------------------------------------
def attention_block_forward(params, x_nchw, *, num_heads):
    B, C, H, W = x_nchw.shape
    S = H * W
    head_dim = C // num_heads
    x_cs = x_nchw.reshape(B, C, S)            # free contiguous reshape, no transpose
    kernel = functools.partial(_attention_block_kernel,
                               num_heads=num_heads,
                               scale=1.0 / math.sqrt(head_dim))
    out = pl.pallas_call(
        kernel,
        out_shape=jax.ShapeDtypeStruct((B, C, S), x_nchw.dtype),
        grid=(B,),
        in_specs=[
            pl.BlockSpec((1, C, S), lambda b: (b, 0, 0)),
            pl.BlockSpec((3 * C, C), lambda b: (0, 0)),      # resident weight
            pl.BlockSpec((3 * C, 1), lambda b: (0, 0)),      # resident bias
        ],
        out_specs=pl.BlockSpec((1, C, S), lambda b: (b, 0, 0)),
        scratch_shapes=[pltpu.VMEM((3 * C, S), jnp.float32)],
        compiler_params=pltpu.CompilerParams(
            dimension_semantics=("parallel",)),
    )(x_cs, params["qkv_w"], params["qkv_b"].reshape(3 * C, 1))
    return out.reshape(B, C, H, W)


# ---------------------------------------------------------------------------
# Pure-JAX f32 reference (mirrors the PyTorch forward)
# ---------------------------------------------------------------------------
def attention_block_reference(params, x_nchw, *, num_heads):
    B, C, H, W = x_nchw.shape
    S = H * W
    hd = C // num_heads
    x = jnp.transpose(x_nchw.reshape(B, C, S), (0, 2, 1))            # (B, S, C)
    qkv = x @ params["qkv_w"].T + params["qkv_b"]                    # (B, S, 3C)
    q, k, v = jnp.split(qkv, 3, axis=-1)

    def split_heads(t):
        return jnp.transpose(t.reshape(B, S, num_heads, hd), (0, 2, 1, 3))

    q, k, v = split_heads(q), split_heads(k), split_heads(v)
    attn = jnp.einsum("bnqd,bnkd->bnqk", q, k) / math.sqrt(hd)
    attn = jax.nn.softmax(attn, axis=-1)
    o = jnp.einsum("bnqk,bnkd->bnqd", attn, v)
    o = jnp.transpose(o, (0, 2, 1, 3)).reshape(B, S, C)
    o = jnp.transpose(o, (0, 2, 1)).reshape(B, C, H, W)
    return o + x_nchw


# ---------------------------------------------------------------------------
# Main
# ---------------------------------------------------------------------------
if __name__ == "__main__":
    # d_embed must be a multiple of 32 (GroupNorm(32, d_embed) in __init__) and
    # divisible by num_heads.
    B, C, H, W = 2, 64, 16, 16
    num_heads = 4

    key = jax.random.PRNGKey(0)
    kw, kb, kx = jax.random.split(key, 3)
    params = {
        # PyTorch nn.Linear layout: weight (out=3C, in=C), bias (3C,)
        "qkv_w": 0.1 * jax.random.normal(kw, (3 * C, C), jnp.float32),
        "qkv_b": 0.05 * jax.random.normal(kb, (3 * C,), jnp.float32),
    }
    x = jax.random.normal(kx, (B, C, H, W), jnp.float32)             # NCHW

    fwd = jax.jit(functools.partial(attention_block_forward, num_heads=num_heads))
    out = jax.block_until_ready(fwd(params, x))

    ref = attention_block_reference(params, x, num_heads=num_heads)
    assert out.shape == (B, C, H, W), out.shape
    max_err = float(jnp.max(jnp.abs(out - ref)))
    # bf16 MXU operands (+ approx reciprocal) vs. an f32 reference: bf16-level
    # tolerance; f32 accumulation keeps the error well inside 2e-2 at these sizes.
    assert jnp.allclose(out, ref, atol=2e-2, rtol=2e-2), max_err

    print("KERNEL_OK")
</pallas_src>

<mosaic_0001>
module attributes {stable_mosaic.version = 11 : i64} {
  func.func @_attention_block_kernel(%arg0: i32, %arg1: memref<1x64x256xf32, #tpu.memory_space<vmem>>, %arg2: memref<192x64xf32, #tpu.memory_space<vmem>>, %arg3: memref<192x1xf32, #tpu.memory_space<vmem>>, %arg4: memref<1x64x256xf32, #tpu.memory_space<vmem>>, %arg5: memref<192x256xf32, #tpu.memory_space<vmem>>) attributes {dimension_semantics = [#tpu.dimension_semantics<parallel>], iteration_bounds = array<i64: 2>, scalar_prefetch = 0 : i64, scratch_operands = 1 : i64, tpu.core_type = #tpu.core_type<tc>, window_params = [{transform_indices = @transform_0, window_bounds = array<i64: 1, 64, 256>}, {pipeline_mode = #tpu.pipeline_mode<synchronous>, transform_indices = @transform_1, window_bounds = array<i64: 192, 64>}, {pipeline_mode = #tpu.pipeline_mode<synchronous>, transform_indices = @transform_2, window_bounds = array<i64: 192, 1>}, {transform_indices = @transform_3, window_bounds = array<i64: 1, 64, 256>}]} {
    %c0 = arith.constant 0 : index
    %c0_0 = arith.constant 0 : index
    %c0_1 = arith.constant 0 : index
    %0 = vector.load %arg1[%c0, %c0_0, %c0_1] : memref<1x64x256xf32, #tpu.memory_space<vmem>>, vector<1x64x256xf32>
    %1 = vector.shape_cast %0 : vector<1x64x256xf32> to vector<64x256xf32>
    %2 = arith.truncf %1 : vector<64x256xf32> to vector<64x256xbf16>
    %c0_2 = arith.constant 0 : index
    %c0_3 = arith.constant 0 : index
    %3 = vector.load %arg2[%c0_2, %c0_3] : memref<192x64xf32, #tpu.memory_space<vmem>>, vector<192x64xf32>
    %4 = arith.truncf %3 : vector<192x64xf32> to vector<192x64xbf16>
    %cst = arith.constant dense<0.000000e+00> : vector<192x256xf32>
    %5 = tpu.matmul %4, %2, %cst {dimension_numbers = #tpu.dot_dimension_numbers<[1], [0], [0], [1], [0, 0, 1, 1], [], []>} : vector<192x64xbf16>, vector<64x256xbf16>, vector<192x256xf32> -> vector<192x256xf32>
    %c0_4 = arith.constant 0 : index
    %c0_5 = arith.constant 0 : index
    %6 = vector.load %arg3[%c0_4, %c0_5] : memref<192x1xf32, #tpu.memory_space<vmem>>, vector<192x1xf32>
    %7 = vector.broadcast %6 : vector<192x1xf32> to vector<192x256xf32>
    %8 = arith.addf %5, %7 : vector<192x256xf32>
    %c0_6 = arith.constant 0 : index
    %c0_7 = arith.constant 0 : index
    %9 = vector.load %arg5[%c0_6, %c0_7] : memref<192x256xf32, #tpu.memory_space<vmem>>, vector<192x256xf32>
    tpu.vector_store %arg5[%c0_6, %c0_7], %8 {strides = array<i32>} : memref<192x256xf32, #tpu.memory_space<vmem>>, vector<192x256xf32>,
    %c0_i32 = arith.constant 0 : i32
    %c4_i32 = arith.constant 4 : i32
    %10 = arith.addi %c0_i32, %c4_i32 : i32
    %c1_i32 = arith.constant 1 : i32
    scf.for %arg6 = %c0_i32 to %10 step %c1_i32  : i32 {
      %c16_i32 = arith.constant 16 : i32
      %11 = arith.muli %arg6, %c16_i32 : i32
      %12 = tpu.assume_multiple %11, 8 : i32
      %c16_i32_9 = arith.constant 16 : i32
      %13 = arith.muli %arg6, %c16_i32_9 : i32
      %c64_i32 = arith.constant 64 : i32
      %14 = arith.addi %c64_i32, %13 : i32
      %15 = tpu.assume_multiple %14, 8 : i32
      %c16_i32_10 = arith.constant 16 : i32
      %16 = arith.muli %arg6, %c16_i32_10 : i32
      %c128_i32 = arith.constant 128 : i32
      %17 = arith.addi %c128_i32, %16 : i32
      %18 = tpu.assume_multiple %17, 8 : i32
      %19 = arith.index_cast %12 : i32 to index
      %c0_11 = arith.constant 0 : index
      %20 = vector.load %arg5[%19, %c0_11] : memref<192x256xf32, #tpu.memory_space<vmem>>, vector<16x256xf32>
      %21 = arith.index_cast %15 : i32 to index
      %c0_12 = arith.constant 0 : index
      %22 = vector.load %arg5[%21, %c0_12] : memref<192x256xf32, #tpu.memory_space<vmem>>, vector<16x256xf32>
      %23 = arith.index_cast %18 : i32 to index
      %c0_13 = arith.constant 0 : index
      %24 = vector.load %arg5[%23, %c0_13] : memref<192x256xf32, #tpu.memory_space<vmem>>, vector<16x256xf32>
      %cst_14 = arith.constant 2.500000e-01 : f32
      %25 = vector.broadcast %cst_14 : f32 to vector<16x256xf32>
      %26 = arith.mulf %20, %25 : vector<16x256xf32>
      %27 = tpu.transpose %26, [1, 0] : vector<16x256xf32> -> vector<256x16xf32>
      %28 = arith.truncf %27 : vector<256x16xf32> to vector<256x16xbf16>
      %29 = arith.truncf %22 : vector<16x256xf32> to vector<16x256xbf16>
      %cst_15 = arith.constant dense<0.000000e+00> : vector<256x256xf32>
      %30 = tpu.matmul %28, %29, %cst_15 {dimension_numbers = #tpu.dot_dimension_numbers<[1], [0], [0], [1], [0, 0, 1, 1], [], []>} : vector<256x16xbf16>, vector<16x256xbf16>, vector<256x256xf32> -> vector<256x256xf32>
      %cst_16 = arith.constant dense<0xFF800000> : vector<256xf32>
      %31 = vector.multi_reduction <maximumf>, %30, %cst_16 [1] : vector<256x256xf32> to vector<256xf32>
      %32 = vector.shape_cast %31 : vector<256xf32> to vector<256x1xf32>
      %33 = vector.broadcast %32 : vector<256x1xf32> to vector<256x256xf32>
      %34 = arith.subf %30, %33 : vector<256x256xf32>
      %35 = math.exp %34 : vector<256x256xf32>
      %cst_17 = arith.constant dense<0.000000e+00> : vector<256xf32>
      %36 = vector.multi_reduction <add>, %35, %cst_17 [1] : vector<256x256xf32> to vector<256xf32>
      %37 = vector.shape_cast %36 : vector<256xf32> to vector<256x1xf32>
      %38 = tpu.transpose %24, [1, 0] : vector<16x256xf32> -> vector<256x16xf32>
      %39 = arith.truncf %38 : vector<256x16xf32> to vector<256x16xbf16>
      %40 = arith.truncf %35 : vector<256x256xf32> to vector<256x256xbf16>
      %cst_18 = arith.constant dense<0.000000e+00> : vector<256x16xf32>
      %41 = tpu.matmul %40, %39, %cst_18 {dimension_numbers = #tpu.dot_dimension_numbers<[1], [0], [0], [1], [0, 0, 1, 1], [], []>} : vector<256x256xbf16>, vector<256x16xbf16>, vector<256x16xf32> -> vector<256x16xf32>
      %42 = tpu.reciprocal %37 {approx = true} : vector<256x1xf32> -> vector<256x1xf32>
      %43 = vector.broadcast %42 : vector<256x1xf32> to vector<256x16xf32>
      %44 = arith.mulf %41, %43 : vector<256x16xf32>
      %c0_19 = arith.constant 0 : index
      %45 = arith.index_cast %12 : i32 to index
      %c0_20 = arith.constant 0 : index
      %46 = vector.load %arg1[%c0_19, %45, %c0_20] : memref<1x64x256xf32, #tpu.memory_space<vmem>>, vector<1x16x256xf32>
      %47 = vector.shape_cast %46 : vector<1x16x256xf32> to vector<16x256xf32>
      %48 = tpu.transpose %44, [1, 0] : vector<256x16xf32> -> vector<16x256xf32>
      %49 = arith.addf %48, %47 : vector<16x256xf32>
      %c0_21 = arith.constant 0 : index
      %50 = arith.index_cast %12 : i32 to index
      %c0_22 = arith.constant 0 : index
      %51 = vector.load %arg4[%c0_21, %50, %c0_22] : memref<1x64x256xf32, #tpu.memory_space<vmem>>, vector<1x16x256xf32>
      %52 = vector.shape_cast %51 : vector<1x16x256xf32> to vector<16x256xf32>
      %53 = vector.shape_cast %49 : vector<16x256xf32> to vector<1x16x256xf32>
      tpu.vector_store %arg4[%c0_21, %50, %c0_22], %53 {strides = array<i32>} : memref<1x64x256xf32, #tpu.memory_space<vmem>>, vector<1x16x256xf32>,
    }
    %c4_i32_8 = arith.constant 4 : i32
    return
  }
  func.func @transform_0(%arg0: i32) -> (i32, i32, i32) {
    %c0_i32 = arith.constant 0 : i32
    %c0_i32_0 = arith.constant 0 : i32
    %c0_i32_1 = arith.constant 0 : i32
    return %arg0, %c0_i32, %c0_i32_0 : i32, i32, i32
  }
  func.func @transform_1(%arg0: i32) -> (i32, i32) {
    %c0_i32 = arith.constant 0 : i32
    %c0_i32_0 = arith.constant 0 : i32
    %c0_i32_1 = arith.constant 0 : i32
    return %c0_i32, %c0_i32_0 : i32, i32
  }
  func.func @transform_2(%arg0: i32) -> (i32, i32) {
    %c0_i32 = arith.constant 0 : i32
    %c0_i32_0 = arith.constant 0 : i32
    %c0_i32_1 = arith.constant 0 : i32
    return %c0_i32, %c0_i32_0 : i32, i32
  }
  func.func @transform_3(%arg0: i32) -> (i32, i32, i32) {
    %c0_i32 = arith.constant 0 : i32
    %c0_i32_0 = arith.constant 0 : i32
    %c0_i32_1 = arith.constant 0 : i32
    return %arg0, %c0_i32, %c0_i32_0 : i32, i32, i32
  }
}

</mosaic_0001>

<llo_original>
// kernel: attention_block_forward.1
$region0: #{attention_block_forward.1}
  #allocation0 [shape = 'u32[]', space=smem, size = 0x4, offset = 0x4, fixed_abs, tag = 'smem constant byte address 0x4 - core index']
  #allocation1 [shape = 'u32[72,128]{1,0:T(1,128)}', space=vmem, size = 0x9000, scoped, tag = 'internal scratch']
  #allocation2 [shape = 'f32[192,256]{1,0:T(8,128)}', space=vmem, size = 0x30000, scoped, tag = 'scratch operand']
  %s0 = inlined_call_operand.vmem [shape: f32[2,64,256], index: 0, kind: input, shape index: {}]
  %s1 = inlined_call_operand.vmem [shape: f32[192,64], index: 1, kind: input, shape index: {}]
  %s2 = inlined_call_operand.vmem [shape: f32[192,1], index: 2, kind: input, shape index: {}]
  %s3 = inlined_call_operand.vmem [shape: f32[2,64,256], index: 3, kind: output, shape index: {}]
  %s4 = sld [smem:[#allocation0]]
  $region52: #{attention_block_forward.1} parent=0
    _
  %s6 = ssub.s32 1, %s4
  %s7 = scalar_select 0, %s6, %s4
  loop: start=0, step=1, limit=4
  $region2: #{attention_block_forward.1} parent=0 // loop_pre_header
    _
  $region3: #{attention_block_forward.1} parent=0 // loop_header
    %s9 = sphi 0, %s13
    %p10 = scmp.ge.s32.totalorder %s9, 4
    %s19 = sphi 0, %s21
    %s22 = sphi 0, %s19
    %s23 = sphi 0, %s22
    %s39 = sphi 0, %s23
    %s43 = sphi 0, %s43
    %s45 = sphi 0, %s43
    %s46 = sphi 0, %s45
    %s60 = sphi 0, %s46
    %s64 = sphi 0, %s64
    %s66 = sphi 0, %s64
    %s67 = sphi 0, %s66
    %s81 = sphi 0, %s67
    %s87 = sphi 0, %s89
    %s90 = sphi 0, %s87
    %s91 = sphi 0, %s90
    %s107 = sphi 0, %s91
  $region4: #{attention_block_forward.1} parent=0 // loop_header_branch
    %12 = sbr.rel (%p10) target = $region8
  $region5: #{attention_block_forward.1} parent=0 // loop_body
    %s14 = ssub.s32 %s9, 1
    %s15 = ssub.s32 %s9, 2
    %s16 = sadd.s32 %s9, 1
    %s17 = ssub.s32 %s9, %s16
    %p18 = scmp.eq.s32.totalorder %s17, 0
    %s20 = sadd.s32 %s19, 1
    %s21 = scalar_select %p18, %s19, %s20
    %p24 = pneg %p18
    %p25 = scmp.eq.s32.totalorder %s9, 1
    %p26 = por %p24, %p25
    %p27 = scmp.ne.s32.totalorder %s19, %s22
    %p28 = scmp.eq.s32.totalorder %s9, 0
    %p29 = por %p27, %p28
    %p30 = scmp.ne.s32.totalorder %s19, %s22
    %p31 = scmp.eq.s32.totalorder %s14, 1
    %p32 = por %p30, %p31
    %p33 = scmp.ne.s32.totalorder %s22, %s23
    %p34 = scmp.eq.s32.totalorder %s14, 0
    %p35 = por %p33, %p34
    %p36 = scmp.ne.s32.totalorder %s22, %s23
    %p37 = scmp.eq.s32.totalorder %s15, 1
    %p38 = por %p36, %p37
    %p40 = scmp.ne.s32.totalorder %s23, %s39
    %p41 = scmp.eq.s32.totalorder %s15, 0
    %p42 = por %p40, %p41
    %s44 = sadd.s32 %s43, 1
    %p47 = scmp.eq.s32.totalorder %s9, 1
    %p48 = scmp.ne.s32.totalorder %s43, %s45
    %p49 = scmp.eq.s32.totalorder %s9, 0
    %p50 = por %p48, %p49
    %p51 = scmp.ne.s32.totalorder %s43, %s45
    %p52 = scmp.eq.s32.totalorder %s14, 1
    %p53 = por %p51, %p52
    %p54 = scmp.ne.s32.totalorder %s45, %s46
    %p55 = scmp.eq.s32.totalorder %s14, 0
    %p56 = por %p54, %p55
    %p57 = scmp.ne.s32.totalorder %s45, %s46
    %p58 = scmp.eq.s32.totalorder %s15, 1
    %p59 = por %p57, %p58
    %p61 = scmp.ne.s32.totalorder %s46, %s60
    %p62 = scmp.eq.s32.totalorder %s15, 0
    %p63 = por %p61, %p62
    %s65 = sadd.s32 %s64, 1
    %p68 = scmp.eq.s32.totalorder %s9, 1
    %p69 = scmp.ne.s32.totalorder %s64, %s66
    %p70 = scmp.eq.s32.totalorder %s9, 0
    %p71 = por %p69, %p70
    %p72 = scmp.ne.s32.totalorder %s64, %s66
    %p73 = scmp.eq.s32.totalorder %s14, 1
    %p74 = por %p72, %p73
    %p75 = scmp.ne.s32.totalorder %s66, %s67
    %p76 = scmp.eq.s32.totalorder %s14, 0
    %p77 = por %p75, %p76
    %p78 = scmp.ne.s32.totalorder %s66, %s67
    %p79 = scmp.eq.s32.totalorder %s15, 1
    %p80 = por %p78, %p79
    %p82 = scmp.ne.s32.totalorder %s67, %s81
    %p83 = scmp.eq.s32.totalorder %s15, 0
    %p84 = por %p82, %p83
    %s85 = ssub.s32 %s9, %s16
    %p86 = scmp.eq.s32.totalorder %s85, 0
    %s88 = sadd.s32 %s87, 1
    %s89 = scalar_select %p86, %s87, %s88
    %p92 = pneg %p86
    %p93 = scmp.eq.s32.totalorder %s9, 1
    %p94 = por %p92, %p93
    %p95 = scmp.ne.s32.totalorder %s87, %s90
    %p96 = scmp.eq.s32.totalorder %s9, 0
    %p97 = por %p95, %p96
    %p98 = scmp.ne.s32.totalorder %s87, %s90
    %p99 = scmp.eq.s32.totalorder %s14, 1
    %p100 = por %p98, %p99
    %p101 = scmp.ne.s32.totalorder %s90, %s91
    %p102 = scmp.eq.s32.totalorder %s14, 0
    %p103 = por %p101, %p102
    %p104 = scmp.ne.s32.totalorder %s90, %s91
    %p105 = scmp.eq.s32.totalorder %s15, 1
    %p106 = por %p104, %p105
    %p108 = scmp.ne.s32.totalorder %s91, %s107
    %p109 = scmp.eq.s32.totalorder %s15, 0
    %p110 = por %p108, %p109
    %p111 = scmp.le.s32.totalorder 1, %s9
    %p112 = scmp.lt.s32.totalorder %s9, 3
    %p113 = pnand %p111, %p112
    %p114 = pneg %p113
    // Predicated region
    $region9: #{attention_block_forward.1} parent=5 // pred_check
      _
    $region10: #{attention_block_forward.1} parent=5 // pred_check_branch
      %116 = sbr.rel (%p113) target = $region12
    $region11: #{attention_block_forward.1} parent=5 // pred_region
      %s117 = ssub.s32 %s9, 1
      // Predicated region
      $region13: #{attention_block_forward.1} parent=11 // pred_check
        %p118 = pneg %p56
      $region14: #{attention_block_forward.1} parent=11 // pred_check_branch
        %120 = sbr.rel (%p118) target = $region16
      $region15: #{attention_block_forward.1} parent=11 // pred_region
        _
      $region16: #{attention_block_forward.1} parent=11 // pred_fallthru
        _
      // Predicated region
      $region17: #{attention_block_forward.1} parent=11 // pred_check
        %p121 = pneg %p77
      $region18: #{attention_block_forward.1} parent=11 // pred_check_branch
        %123 = sbr.rel (%p121) target = $region20
      $region19: #{attention_block_forward.1} parent=11 // pred_region
        _
      $region20: #{attention_block_forward.1} parent=11 // pred_fallthru
        _
    $region12: #{attention_block_forward.1} parent=5 // pred_fallthru
      _
    %p124 = scmp.lt.s32.totalorder %s9, 2
    // Predicated region
    $region21: #{attention_block_forward.1} parent=5 // pred_check
      %p125 = pneg %p124
    $region22: #{attention_block_forward.1} parent=5 // pred_check_branch
      %127 = sbr.rel (%p125) target = $region24
    $region23: #{attention_block_forward.1} parent=5 // pred_region
      // Predicated region
      $region25: #{attention_block_forward.1} parent=23 // pred_check
        %p128 = pneg %p29
      $region26: #{attention_block_forward.1} parent=23 // pred_check_branch
        %130 = sbr.rel (%p128) target = $region28
      $region27: #{attention_block_forward.1} parent=23 // pred_region
        %p131 = scmp.lt.s32.totalorder %s9, 1
        %s132 = scalar_select %p131, %s9, 1
        %s133 = smul.addr %s132, 16
        %s134 = smul.addr %s133, 8
        %s135 = scalar_lea.vmem %s0, %s134
      $region28: #{attention_block_forward.1} parent=23 // pred_fallthru
        _
    $region24: #{attention_block_forward.1} parent=5 // pred_fallthru
      _
    %p136 = scmp.le.s32.totalorder 1, %s9
    %p137 = scmp.lt.s32.totalorder %s9, 3
    %p138 = pnand %p136, %p137
    %p139 = pneg %p138
    // Predicated region
    $region29: #{attention_block_forward.1} parent=5 // pred_check
      _
    $region30: #{attention_block_forward.1} parent=5 // pred_check_branch
      %141 = sbr.rel (%p138) target = $region32
    $region31: #{attention_block_forward.1} parent=5 // pred_region
      %s142 = ssub.s32 %s9, 1
      %p143 = scmp.lt.s32.totalorder %s14, 1
      %s144 = scalar_select %p143, %s14, 1
      %s145 = smul.addr %s144, 16
      %s146 = smul.addr %s145, 8
      %s147 = scalar_lea.vmem %s0, %s146
      %p148 = pneg %p35
      %p149 = pneg %p32
      %p150 = pneg %p56
      %p151 = pneg %p53
      %p152 = pneg %p77
      %p153 = pneg %p74
      %p154 = pneg %p103
      %p155 = pneg %p100
      %p156 = scmp.lt.s32.totalorder %s14, 1
      %s157 = scalar_select %p156, %s14, 1
      %s158 = smul.addr %s157, 16
      %s159 = smul.addr %s158, 8
      %s160 = scalar_lea.vmem %s3, %s159
      %p161 = scmp.lt.s32.totalorder %s14, 1
      %s162 = scalar_select %p161, %s14, 1
      %s163 = smul.addr %s162, 16
      %s164 = smul.addr %s163, 8
      %s165 = scalar_lea.vmem %s0, %s164
      %p166 = scmp.lt.s32.totalorder %s14, 1
      %s167 = scalar_select %p166, %s14, 1
      %s168 = smul.addr %s167, 16
      %s169 = smul.addr %s168, 8
      %s170 = scalar_lea.vmem %s3, %s169
      %v172 = vld [vmem:[%s165] sm:$0xff]
      %v173 = vld [vmem:[%s165 + $0x8] sm:$0xff]
      %v174 = vld [vmem:[%s165 + $0x10] sm:$0xff]
      %v175 = vld [vmem:[%s165 + $0x18] sm:$0xff]
      %v176 = vld [vmem:[%s165 + $0x20] sm:$0xff]
      %v177 = vld [vmem:[%s165 + $0x28] sm:$0xff]
      %v178 = vld [vmem:[%s165 + $0x30] sm:$0xff]
      %v179 = vld [vmem:[%s165 + $0x38] sm:$0xff]
      %v180 = vld [vmem:[%s165 + $0x40] sm:$0xff]
      %v181 = vld [vmem:[%s165 + $0x48] sm:$0xff]
      %v182 = vld [vmem:[%s165 + $0x50] sm:$0xff]
      %v183 = vld [vmem:[%s165 + $0x58] sm:$0xff]
      %v184 = vld [vmem:[%s165 + $0x60] sm:$0xff]
      %v185 = vld [vmem:[%s165 + $0x68] sm:$0xff]
      %v186 = vld [vmem:[%s165 + $0x70] sm:$0xff]
      %v187 = vld [vmem:[%s165 + $0x78] sm:$0xff]
      %v188 = vpack.c.bf16 %v174, %v172
      %v189 = vpack.c.bf16 %v175, %v173
      %v190 = vpack.c.bf16 %v178, %v176
      %v191 = vpack.c.bf16 %v179, %v177
      %v192 = vpack.c.bf16 %v182, %v180
      %v193 = vpack.c.bf16 %v183, %v181
      %v194 = vpack.c.bf16 %v186, %v184
      %v195 = vpack.c.bf16 %v187, %v185
      %v196 = vld [vmem:[%s1] sm:$0xff]
      %v197 = vld [vmem:[%s1 + $0x8] sm:$0xff]
      %v198 = vld [vmem:[%s1 + $0x10] sm:$0xff]
      %v199 = vld [vmem:[%s1 + $0x18] sm:$0xff]
      %v200 = vld [vmem:[%s1 + $0x20] sm:$0xff]
      %v201 = vld [vmem:[%s1 + $0x28] sm:$0xff]
      %v202 = vld [vmem:[%s1 + $0x30] sm:$0xff]
      %v203 = vld [vmem:[%s1 + $0x38] sm:$0xff]
      %v204 = vld [vmem:[%s1 + $0x40] sm:$0xff]
      %v205 = vld [vmem:[%s1 + $0x48] sm:$0xff]
      %v206 = vld [vmem:[%s1 + $0x50] sm:$0xff]
      %v207 = vld [vmem:[%s1 + $0x58] sm:$0xff]
      %v208 = vld [vmem:[%s1 + $0x60] sm:$0xff]
      %v209 = vld [vmem:[%s1 + $0x68] sm:$0xff]
      %v210 = vld [vmem:[%s1 + $0x70] sm:$0xff]
      %v211 = vld [vmem:[%s1 + $0x78] sm:$0xff]
      %v212 = vld [vmem:[%s1 + $0x80] sm:$0xff]
      %v213 = vld [vmem:[%s1 + $0x88] sm:$0xff]
      %v214 = vld [vmem:[%s1 + $0x90] sm:$0xff]
      %v215 = vld [vmem:[%s1 + $0x98] sm:$0xff]
      %v216 = vld [vmem:[%s1 + $0xa0] sm:$0xff]
      %v217 = vld [vmem:[%s1 + $0xa8] sm:$0xff]
      %v218 = vld [vmem:[%s1 + $0xb0] sm:$0xff]
      %v219 = vld [vmem:[%s1 + $0xb8] sm:$0xff]
      %v220 = vpack.c.bf16 %v197, %v196
      %v221 = vpack.c.bf16 %v199, %v198
      %v222 = vpack.c.bf16 %v201, %v200
      %v223 = vpack.c.bf16 %v203, %v202
      %v224 = vpack.c.bf16 %v205, %v204
      %v225 = vpack.c.bf16 %v207, %v206
      %v226 = vpack.c.bf16 %v209, %v208
      %v227 = vpack.c.bf16 %v211, %v210
      %v228 = vpack.c.bf16 %v213, %v212
      %v229 = vpack.c.bf16 %v215, %v214
      %v230 = vpack.c.bf16 %v217, %v216
      %v231 = vpack.c.bf16 %v219, %v218
      %v232 = vld [vmem:[%s2] sm:$0xff]
      %v233 = vld [vmem:[%s2 + $0x8] sm:$0xff]
      %v234 = vld [vmem:[%s2 + $0x10] sm:$0xff]
      %v235 = vld [vmem:[%s2 + $0x18] sm:$0xff]
      %v236 = vld [vmem:[%s2 + $0x20] sm:$0xff]
      %v237 = vld [vmem:[%s2 + $0x28] sm:$0xff]
      %v238 = vld [vmem:[%s2 + $0x30] sm:$0xff]
      %v239 = vld [vmem:[%s2 + $0x38] sm:$0xff]
      %v240 = vld [vmem:[%s2 + $0x40] sm:$0xff]
      %v241 = vld [vmem:[%s2 + $0x48] sm:$0xff]
      %v242 = vld [vmem:[%s2 + $0x50] sm:$0xff]
      %v243 = vld [vmem:[%s2 + $0x58] sm:$0xff]
      %v244 = vld [vmem:[%s2 + $0x60] sm:$0xff]
      %v245 = vld [vmem:[%s2 + $0x68] sm:$0xff]
      %v246 = vld [vmem:[%s2 + $0x70] sm:$0xff]
      %v247 = vld [vmem:[%s2 + $0x78] sm:$0xff]
      %v248 = vld [vmem:[%s2 + $0x80] sm:$0xff]
      %v249 = vld [vmem:[%s2 + $0x88] sm:$0xff]
      %v250 = vld [vmem:[%s2 + $0x90] sm:$0xff]
      %v251 = vld [vmem:[%s2 + $0x98] sm:$0xff]
      %v252 = vld [vmem:[%s2 + $0xa0] sm:$0xff]
      %v253 = vld [vmem:[%s2 + $0xa8] sm:$0xff]
      %v254 = vld [vmem:[%s2 + $0xb0] sm:$0xff]
      %v255 = vld [vmem:[%s2 + $0xb8] sm:$0xff]
      %257 = vset.pattern.permute.xlu0 0
      %258 = vperm.xlu0 %257, %v232
      %v259 = vpop.permute.xlu0 %258
      %262 = vset.pattern.permute.xlu0 0
      %263 = vperm.xlu0 %262, %v233
      %v264 = vpop.permute.xlu0 %263
      %267 = vset.pattern.permute.xlu0 0
      %268 = vperm.xlu0 %267, %v234
      %v269 = vpop.permute.xlu0 %268
      %272 = vset.pattern.permute.xlu0 0
      %273 = vperm.xlu0 %272, %v235
      %v274 = vpop.permute.xlu0 %273
      %277 = vset.pattern.permute.xlu0 0
      %278 = vperm.xlu0 %277, %v236
      %v279 = vpop.permute.xlu0 %278
      %282 = vset.pattern.permute.xlu0 0
      %283 = vperm.xlu0 %282, %v237
      %v284 = vpop.permute.xlu0 %283
      %287 = vset.pattern.permute.xlu0 0
      %288 = vperm.xlu0 %287, %v238
      %v289 = vpop.permute.xlu0 %288
      %292 = vset.pattern.permute.xlu0 0
      %293 = vperm.xlu0 %292, %v239
      %v294 = vpop.permute.xlu0 %293
      %297 = vset.pattern.permute.xlu0 0
      %298 = vperm.xlu0 %297, %v240
      %v299 = vpop.permute.xlu0 %298
      %302 = vset.pattern.permute.xlu0 0
      %303 = vperm.xlu0 %302, %v241
      %v304 = vpop.permute.xlu0 %303
      %307 = vset.pattern.permute.xlu0 0
      %308 = vperm.xlu0 %307, %v242
      %v309 = vpop.permute.xlu0 %308
      %312 = vset.pattern.permute.xlu0 0
      %313 = vperm.xlu0 %312, %v243
      %v314 = vpop.permute.xlu0 %313
      %317 = vset.pattern.permute.xlu0 0
      %318 = vperm.xlu0 %317, %v244
      %v319 = vpop.permute.xlu0 %318
      %322 = vset.pattern.permute.xlu0 0
      %323 = vperm.xlu0 %322, %v245
      %v324 = vpop.permute.xlu0 %323
      %327 = vset.pattern.permute.xlu0 0
      %328 = vperm.xlu0 %327, %v246
      %v329 = vpop.permute.xlu0 %328
      %332 = vset.pattern.permute.xlu0 0
      %333 = vperm.xlu0 %332, %v247
      %v334 = vpop.permute.xlu0 %333
      %337 = vset.pattern.permute.xlu0 0
      %338 = vperm.xlu0 %337, %v248
      %v339 = vpop.permute.xlu0 %338
      %342 = vset.pattern.permute.xlu0 0
      %343 = vperm.xlu0 %342, %v249
      %v344 = vpop.permute.xlu0 %343
      %347 = vset.pattern.permute.xlu0 0
      %348 = vperm.xlu0 %347, %v250
      %v349 = vpop.permute.xlu0 %348
      %352 = vset.pattern.permute.xlu0 0
      %353 = vperm.xlu0 %352, %v251
      %v354 = vpop.permute.xlu0 %353
      %357 = vset.pattern.permute.xlu0 0
      %358 = vperm.xlu0 %357, %v252
      %v359 = vpop.permute.xlu0 %358
      %362 = vset.pattern.permute.xlu0 0
      %363 = vperm.xlu0 %362, %v253
      %v364 = vpop.permute.xlu0 %363
      %367 = vset.pattern.permute.xlu0 0
      %368 = vperm.xlu0 %367, %v254
      %v369 = vpop.permute.xlu0 %368
      %372 = vset.pattern.permute.xlu0 0
      %373 = vperm.xlu0 %372, %v255
      %v374 = vpop.permute.xlu0 %373
      %vm376 = vcmask 523264
      %v378 = vsel %vm376, %v220, 0
      %v381 = vsel %vm376, %v221, 0
      %v384 = vsel %vm376, %v222, 0
      %v387 = vsel %vm376, %v223, 0
      %v390 = vsel %vm376, %v224, 0
      %v393 = vsel %vm376, %v225, 0
      %v396 = vsel %vm376, %v226, 0
      %v399 = vsel %vm376, %v227, 0
      %v402 = vsel %vm376, %v228, 0
      %v405 = vsel %vm376, %v229, 0
      %v408 = vsel %vm376, %v230, 0
      %v411 = vsel %vm376, %v231, 0
      %413 = vmatpush.bf16.msra.mxu0 0
      %414 = vmatpush.bf16.msra.mxu0 0
      %415 = vmatpush.bf16.msra.mxu0 0
      %416 = vmatpush.bf16.msra.mxu0 0
      %417 = vmatpush.bf16.msra.mxu0 %v194
      %418 = vmatpush.bf16.msra.mxu0 %v192
      %419 = vmatpush.bf16.msra.mxu0 %v190
      %420 = vmatpush.bf16.msra.mxu0 %v188
      %421 = vmatmul.bf16.gmra.mxu0 %v378
      %v422 = vpop.f32.mrf.mxu0
      %v423 = vadd.f32 %v259, %v422
      %v424 = vpop.f32.mrf.mxu0
      %v425 = vadd.f32 %v264, %v424
      %426 = vmatmul.bf16.gmra.mxu0 %v381
      %v427 = vpop.f32.mrf.mxu0
      %v428 = vadd.f32 %v269, %v427
      %v429 = vpop.f32.mrf.mxu0
      %v430 = vadd.f32 %v274, %v429
      %431 = vmatmul.bf16.gmra.mxu0 %v384
      %v432 = vpop.f32.mrf.mxu0
      %v433 = vadd.f32 %v279, %v432
      %v434 = vpop.f32.mrf.mxu0
      %v435 = vadd.f32 %v284, %v434
      %436 = vmatmul.bf16.gmra.mxu0 %v387
      %v437 = vpop.f32.mrf.mxu0
      %v438 = vadd.f32 %v289, %v437
      %v439 = vpop.f32.mrf.mxu0
      %v440 = vadd.f32 %v294, %v439
      %441 = vmatmul.bf16.gmra.mxu0 %v390
      %v442 = vpop.f32.mrf.mxu0
      %v443 = vadd.f32 %v299, %v442
      %v444 = vpop.f32.mrf.mxu0
      %v445 = vadd.f32 %v304, %v444
      %446 = vmatmul.bf16.gmra.mxu0 %v393
      %v447 = vpop.f32.mrf.mxu0
      %v448 = vadd.f32 %v309, %v447
      %v449 = vpop.f32.mrf.mxu0
      %v450 = vadd.f32 %v314, %v449
      %451 = vmatmul.bf16.gmra.mxu0 %v396
      %v452 = vpop.f32.mrf.mxu0
      %v453 = vadd.f32 %v319, %v452
      %v454 = vpop.f32.mrf.mxu0
      %v455 = vadd.f32 %v324, %v454
      %456 = vmatmul.bf16.gmra.mxu0 %v399
      %v457 = vpop.f32.mrf.mxu0
      %v458 = vadd.f32 %v329, %v457
      %v459 = vpop.f32.mrf.mxu0
      %v460 = vadd.f32 %v334, %v459
      %461 = vmatmul.bf16.gmra.mxu0 %v402
      %v462 = vpop.f32.mrf.mxu0
      %v463 = vadd.f32 %v339, %v462
      %v464 = vpop.f32.mrf.mxu0
      %v465 = vadd.f32 %v344, %v464
      %466 = vmatmul.bf16.gmra.mxu0 %v405
      %v467 = vpop.f32.mrf.mxu0
      %v468 = vadd.f32 %v349, %v467
      %v469 = vpop.f32.mrf.mxu0
      %v470 = vadd.f32 %v354, %v469
      %471 = vmatmul.bf16.gmra.mxu0 %v408
      %v472 = vpop.f32.mrf.mxu0
      %v473 = vadd.f32 %v359, %v472
      %v474 = vpop.f32.mrf.mxu0
      %v475 = vadd.f32 %v364, %v474
      %476 = vmatmul.bf16.gmra.mxu0 %v411
      %v477 = vpop.f32.mrf.mxu0
      %v478 = vadd.f32 %v369, %v477
      %v479 = vpop.f32.mrf.mxu0
      %v480 = vadd.f32 %v374, %v479
      %481 = vdwg.mxu0
      %482 = vmatpush.bf16.msra.mxu0 0
      %483 = vmatpush.bf16.msra.mxu0 0
      %484 = vmatpush.bf16.msra.mxu0 0
      %485 = vmatpush.bf16.msra.mxu0 0
      %486 = vmatpush.bf16.msra.mxu0 %v195
      %487 = vmatpush.bf16.msra.mxu0 %v193
      %488 = vmatpush.bf16.msra.mxu0 %v191
      %489 = vmatpush.bf16.msra.mxu0 %v189
      %490 = vmatmul.bf16.gmra.mxu0 %v378
      %v491 = vpop.f32.mrf.mxu0
      %v492 = vadd.f32 %v259, %v491
      %v493 = vpop.f32.mrf.mxu0
      %v494 = vadd.f32 %v264, %v493
      %495 = vmatmul.bf16.gmra.mxu0 %v381
      %v496 = vpop.f32.mrf.mxu0
      %v497 = vadd.f32 %v269, %v496
      %v498 = vpop.f32.mrf.mxu0
      %v499 = vadd.f32 %v274, %v498
      %500 = vmatmul.bf16.gmra.mxu0 %v384
      %v501 = vpop.f32.mrf.mxu0
      %v502 = vadd.f32 %v279, %v501
      %v503 = vpop.f32.mrf.mxu0
      %v504 = vadd.f32 %v284, %v503
      %505 = vmatmul.bf16.gmra.mxu0 %v387
      %v506 = vpop.f32.mrf.mxu0
      %v507 = vadd.f32 %v289, %v506
      %v508 = vpop.f32.mrf.mxu0
      %v509 = vadd.f32 %v294, %v508
      %510 = vmatmul.bf16.gmra.mxu0 %v390
      %v511 = vpop.f32.mrf.mxu0
      %v512 = vadd.f32 %v299, %v511
      %v513 = vpop.f32.mrf.mxu0
      %v514 = vadd.f32 %v304, %v513
      %515 = vmatmul.bf16.gmra.mxu0 %v393
      %v516 = vpop.f32.mrf.mxu0
      %v517 = vadd.f32 %v309, %v516
      %v518 = vpop.f32.mrf.mxu0
      %v519 = vadd.f32 %v314, %v518
      %520 = vmatmul.bf16.gmra.mxu0 %v396
      %v521 = vpop.f32.mrf.mxu0
      %v522 = vadd.f32 %v319, %v521
      %v523 = vpop.f32.mrf.mxu0
      %v524 = vadd.f32 %v324, %v523
      %525 = vmatmul.bf16.gmra.mxu0 %v399
      %v526 = vpop.f32.mrf.mxu0
      %v527 = vadd.f32 %v329, %v526
      %v528 = vpop.f32.mrf.mxu0
      %v529 = vadd.f32 %v334, %v528
      %530 = vmatmul.bf16.gmra.mxu0 %v402
      %v531 = vpop.f32.mrf.mxu0
      %v532 = vadd.f32 %v339, %v531
      %v533 = vpop.f32.mrf.mxu0
      %v534 = vadd.f32 %v344, %v533
      %535 = vmatmul.bf16.gmra.mxu0 %v405
      %v536 = vpop.f32.mrf.mxu0
      %v537 = vadd.f32 %v349, %v536
      %v538 = vpop.f32.mrf.mxu0
      %v539 = vadd.f32 %v354, %v538
      %540 = vmatmul.bf16.gmra.mxu0 %v408
      %v541 = vpop.f32.mrf.mxu0
      %v542 = vadd.f32 %v359, %v541
      %v543 = vpop.f32.mrf.mxu0
      %v544 = vadd.f32 %v364, %v543
      %545 = vmatmul.bf16.gmra.mxu0 %v411
      %v546 = vpop.f32.mrf.mxu0
      %v547 = vadd.f32 %v369, %v546
      %v548 = vpop.f32.mrf.mxu0
      %v549 = vadd.f32 %v374, %v548
      %550 = vdwg.mxu0
      %551 = vst [vmem:[#allocation2] sm:$0xff] %v423
      %552 = vst [vmem:[#allocation2 + $0x8] sm:$0xff] %v492
      %553 = vst [vmem:[#allocation2 + $0x10] sm:$0xff] %v425
      %554 = vst [vmem:[#allocation2 + $0x18] sm:$0xff] %v494
      %555 = vst [vmem:[#allocation2 + $0x20] sm:$0xff] %v428
      %556 = vst [vmem:[#allocation2 + $0x28] sm:$0xff] %v497
      %557 = vst [vmem:[#allocation2 + $0x30] sm:$0xff] %v430
      %558 = vst [vmem:[#allocation2 + $0x38] sm:$0xff] %v499
      %559 = vst [vmem:[#allocation2 + $0x40] sm:$0xff] %v433
      %560 = vst [vmem:[#allocation2 + $0x48] sm:$0xff] %v502
      %561 = vst [vmem:[#allocation2 + $0x50] sm:$0xff] %v435
      %562 = vst [vmem:[#allocation2 + $0x58] sm:$0xff] %v504
      %563 = vst [vmem:[#allocation2 + $0x60] sm:$0xff] %v438
      %564 = vst [vmem:[#allocation2 + $0x68] sm:$0xff] %v507
      %565 = vst [vmem:[#allocation2 + $0x70] sm:$0xff] %v440
      %566 = vst [vmem:[#allocation2 + $0x78] sm:$0xff] %v509
      %567 = vst [vmem:[#allocation2 + $0x80] sm:$0xff] %v443
      %568 = vst [vmem:[#allocation2 + $0x88] sm:$0xff] %v512
      %569 = vst [vmem:[#allocation2 + $0x90] sm:$0xff] %v445
      %570 = vst [vmem:[#allocation2 + $0x98] sm:$0xff] %v514
      %571 = vst [vmem:[#allocation2 + $0xa0] sm:$0xff] %v448
      %572 = vst [vmem:[#allocation2 + $0xa8] sm:$0xff] %v517
      %573 = vst [vmem:[#allocation2 + $0xb0] sm:$0xff] %v450
      %574 = vst [vmem:[#allocation2 + $0xb8] sm:$0xff] %v519
      %575 = vst [vmem:[#allocation2 + $0xc0] sm:$0xff] %v453
      %576 = vst [vmem:[#allocation2 + $0xc8] sm:$0xff] %v522
      %577 = vst [vmem:[#allocation2 + $0xd0] sm:$0xff] %v455
      %578 = vst [vmem:[#allocation2 + $0xd8] sm:$0xff] %v524
      %579 = vst [vmem:[#allocation2 + $0xe0] sm:$0xff] %v458
      %580 = vst [vmem:[#allocation2 + $0xe8] sm:$0xff] %v527
      %581 = vst [vmem:[#allocation2 + $0xf0] sm:$0xff] %v460
      %582 = vst [vmem:[#allocation2 + $0xf8] sm:$0xff] %v529
      %583 = vst [vmem:[#allocation2 + $0x100] sm:$0xff] %v463
      %584 = vst [vmem:[#allocation2 + $0x108] sm:$0xff] %v532
      %585 = vst [vmem:[#allocation2 + $0x110] sm:$0xff] %v465
      %586 = vst [vmem:[#allocation2 + $0x118] sm:$0xff] %v534
      %587 = vst [vmem:[#allocation2 + $0x120] sm:$0xff] %v468
      %588 = vst [vmem:[#allocation2 + $0x128] sm:$0xff] %v537
      %589 = vst [vmem:[#allocation2 + $0x130] sm:$0xff] %v470
      %590 = vst [vmem:[#allocation2 + $0x138] sm:$0xff] %v539
      %591 = vst [vmem:[#allocation2 + $0x140] sm:$0xff] %v473
      %592 = vst [vmem:[#allocation2 + $0x148] sm:$0xff] %v542
      %593 = vst [vmem:[#allocation2 + $0x150] sm:$0xff] %v475
      %594 = vst [vmem:[#allocation2 + $0x158] sm:$0xff] %v544
      %595 = vst [vmem:[#allocation2 + $0x160] sm:$0xff] %v478
      %596 = vst [vmem:[#allocation2 + $0x168] sm:$0xff] %v547
      %597 = vst [vmem:[#allocation2 + $0x170] sm:$0xff] %v480
      %598 = vst [vmem:[#allocation2 + $0x178] sm:$0xff] %v549
      loop: start=0, step=1, limit=4
      $region33: #{attention_block_forward.1} parent=31 // loop_pre_header
        _
      $region34: #{attention_block_forward.1} parent=31 // loop_header
        %s600 = sphi 0, %s604
        %p601 = scmp.ge.s32.totalorder %s600, 4
      $region35: #{attention_block_forward.1} parent=31 // loop_header_branch
        %603 = sbr.rel (%p601) target = $region39
      $region36: #{attention_block_forward.1} parent=31 // loop_body
        %s605 = smul.u32 %s600, 16
        %s606 = sadd.s32 %s605, 64
        %s607 = sadd.s32 %s605, 128
        %s608 = sshra.s32 %s605, 3
        %s609 = sand.u32 %s605, 7
        %s610 = smul.u32 %s608, 2
        %s611 = smul.addr %s610, 8
        %s612 = scalar_lea.vmem [#allocation2], %s611
        %v613 = vld [vmem:[%s612] sm:$0xff]
        %v614 = vld [vmem:[%s612 + $0x8] sm:$0xff]
        %v615 = vld [vmem:[%s612 + $0x10] sm:$0xff]
        %v616 = vld [vmem:[%s612 + $0x18] sm:$0xff]
        %s617 = sshra.s32 %s606, 3
        %s618 = sand.u32 %s606, 7
        %s619 = smul.u32 %s617, 2
        %s620 = smul.addr %s619, 8
        %s621 = scalar_lea.vmem [#allocation2], %s620
        %v622 = vld [vmem:[%s621] sm:$0xff]
        %v623 = vld [vmem:[%s621 + $0x8] sm:$0xff]
        %v624 = vld [vmem:[%s621 + $0x10] sm:$0xff]
        %v625 = vld [vmem:[%s621 + $0x18] sm:$0xff]
        %s626 = sshra.s32 %s607, 3
        %s627 = sand.u32 %s607, 7
        %s628 = smul.u32 %s626, 2
        %s629 = smul.addr %s628, 8
        %s630 = scalar_lea.vmem [#allocation2], %s629
        %v631 = vld [vmem:[%s630] sm:$0xff]
        %v632 = vld [vmem:[%s630 + $0x8] sm:$0xff]
        %v633 = vld [vmem:[%s630 + $0x10] sm:$0xff]
        %v634 = vld [vmem:[%s630 + $0x18] sm:$0xff]
        %v635 = vmul.f32 %v613, 0.25
        %v636 = vmul.f32 %v614, 0.25
        %v637 = vmul.f32 %v615, 0.25
        %v638 = vmul.f32 %v616, 0.25
        %639 = vxpose.xlu0.b32.start [1/16] %v635, 128
        %640 = vxpose.xlu0.b32.cont [2/16] %v637, 128
        %641 = vxpose.xlu0.b32.cont [3/16] 0.0, 128
        %642 = vxpose.xlu0.b32.cont [4/16] 0.0, 128
        %643 = vxpose.xlu0.b32.cont [5/16] 0.0, 128
        %644 = vxpose.xlu0.b32.cont [6/16] 0.0, 128
        %645 = vxpose.xlu0.b32.cont [7/16] 0.0, 128
        %646 = vxpose.xlu0.b32.cont [8/16] 0.0, 128
        %647 = vxpose.xlu0.b32.cont [9/16] 0.0, 128
        %648 = vxpose.xlu0.b32.cont [10/16] 0.0, 128
        %649 = vxpose.xlu0.b32.cont [11/16] 0.0, 128
        %650 = vxpose.xlu0.b32.cont [12/16] 0.0, 128
        %651 = vxpose.xlu0.b32.cont [13/16] 0.0, 128
        %652 = vxpose.xlu0.b32.cont [14/16] 0.0, 128
        %653 = vxpose.xlu0.b32.cont [15/16] 0.0, 128
        %654 = vxpose.xlu0.b32.end [16/16] 0.0, 128
        %v655 = vpop.trf.xlu0
        %v656 = vpop.trf.xlu0
        %v657 = vpop.trf.xlu0
        %v658 = vpop.trf.xlu0
        %v659 = vpop.trf.xlu0
        %v660 = vpop.trf.xlu0
        %v661 = vpop.trf.xlu0
        %v662 = vpop.trf.xlu0
        %v663 = vpop.trf.xlu0
        %v664 = vpop.trf.xlu0
        %v665 = vpop.trf.xlu0
        %v666 = vpop.trf.xlu0
        %v667 = vpop.trf.xlu0
        %v668 = vpop.trf.xlu0
        %v669 = vpop.trf.xlu0
        %v670 = vpop.trf.xlu0
        %671 = vxpose.xlu0.b32.start [1/16] %v636, 128
        %672 = vxpose.xlu0.b32.cont [2/16] %v638, 128
        %673 = vxpose.xlu0.b32.cont [3/16] 0.0, 128
        %674 = vxpose.xlu0.b32.cont [4/16] 0.0, 128
        %675 = vxpose.xlu0.b32.cont [5/16] 0.0, 128
        %676 = vxpose.xlu0.b32.cont [6/16] 0.0, 128
        %677 = vxpose.xlu0.b32.cont [7/16] 0.0, 128
        %678 = vxpose.xlu0.b32.cont [8/16] 0.0, 128
        %679 = vxpose.xlu0.b32.cont [9/16] 0.0, 128
        %680 = vxpose.xlu0.b32.cont [10/16] 0.0, 128
        %681 = vxpose.xlu0.b32.cont [11/16] 0.0, 128
        %682 = vxpose.xlu0.b32.cont [12/16] 0.0, 128
        %683 = vxpose.xlu0.b32.cont [13/16] 0.0, 128
        %684 = vxpose.xlu0.b32.cont [14/16] 0.0, 128
        %685 = vxpose.xlu0.b32.cont [15/16] 0.0, 128
        %686 = vxpose.xlu0.b32.end [16/16] 0.0, 128
        %v687 = vpop.trf.xlu0
        %v688 = vpop.trf.xlu0
        %v689 = vpop.trf.xlu0
        %v690 = vpop.trf.xlu0
        %v691 = vpop.trf.xlu0
        %v692 = vpop.trf.xlu0
        %v693 = vpop.trf.xlu0
        %v694 = vpop.trf.xlu0
        %v695 = vpop.trf.xlu0
        %v696 = vpop.trf.xlu0
        %v697 = vpop.trf.xlu0
        %v698 = vpop.trf.xlu0
        %v699 = vpop.trf.xlu0
        %v700 = vpop.trf.xlu0
        %v701 = vpop.trf.xlu0
        %v702 = vpop.trf.xlu0
        %v703 = vpack.c.bf16 %v656, %v655
        %v704 = vpack.c.bf16 %v658, %v657
        %v705 = vpack.c.bf16 %v660, %v659
        %v706 = vpack.c.bf16 %v662, %v661
        %v707 = vpack.c.bf16 %v664, %v663
        %v708 = vpack.c.bf16 %v666, %v665
        %v709 = vpack.c.bf16 %v668, %v667
        %v710 = vpack.c.bf16 %v670, %v669
        %v711 = vpack.c.bf16 %v688, %v687
        %v712 = vpack.c.bf16 %v690, %v689
        %v713 = vpack.c.bf16 %v692, %v691
        %v714 = vpack.c.bf16 %v694, %v693
        %v715 = vpack.c.bf16 %v696, %v695
        %v716 = vpack.c.bf16 %v698, %v697
        %v717 = vpack.c.bf16 %v700, %v699
        %v718 = vpack.c.bf16 %v702, %v701
        %v719 = vpack.c.bf16 %v624, %v622
        %v720 = vpack.c.bf16 %v625, %v623
        %vm721 = vcmask 130048
        %v723 = vsel %vm721, %v703, 0
        %v726 = vsel %vm721, %v704, 0
        %v729 = vsel %vm721, %v705, 0
        %v732 = vsel %vm721, %v706, 0
        %v735 = vsel %vm721, %v707, 0
        %v738 = vsel %vm721, %v708, 0
        %v741 = vsel %vm721, %v709, 0
        %v744 = vsel %vm721, %v710, 0
        %v747 = vsel %vm721, %v711, 0
        %v750 = vsel %vm721, %v712, 0
        %v753 = vsel %vm721, %v713, 0
        %v756 = vsel %vm721, %v714, 0
        %v759 = vsel %vm721, %v715, 0
        %v762 = vsel %vm721, %v716, 0
        %v765 = vsel %vm721, %v717, 0
        %v768 = vsel %vm721, %v718, 0
        %770 = vmatpush.bf16.msra.mxu0 0
        %771 = vmatpush.bf16.msra.mxu0 0
        %772 = vmatpush.bf16.msra.mxu0 0
        %773 = vmatpush.bf16.msra.mxu0 0
        %774 = vmatpush.bf16.msra.mxu0 0
        %775 = vmatpush.bf16.msra.mxu0 0
        %776 = vmatpush.bf16.msra.mxu0 0
        %777 = vmatpush.bf16.msra.mxu0 %v719
        %778 = vmatmul.bf16.gmra.mxu0 %v723
        %v779 = vpop.f32.mrf.mxu0
        %v780 = vadd.f32 0.0, %v779
        %v781 = vpop.f32.mrf.mxu0
        %v782 = vadd.f32 0.0, %v781
        %783 = vmatmul.bf16.gmra.mxu0 %v726
        %v784 = vpop.f32.mrf.mxu0
        %v785 = vadd.f32 0.0, %v784
        %v786 = vpop.f32.mrf.mxu0
        %v787 = vadd.f32 0.0, %v786
        %788 = vmatmul.bf16.gmra.mxu0 %v729
        %v789 = vpop.f32.mrf.mxu0
        %v790 = vadd.f32 0.0, %v789
        %v791 = vpop.f32.mrf.mxu0
        %v792 = vadd.f32 0.0, %v791
        %793 = vmatmul.bf16.gmra.mxu0 %v732
        %v794 = vpop.f32.mrf.mxu0
        %v795 = vadd.f32 0.0, %v794
        %v796 = vpop.f32.mrf.mxu0
        %v797 = vadd.f32 0.0, %v796
        %798 = vmatmul.bf16.gmra.mxu0 %v735
        %v799 = vpop.f32.mrf.mxu0
        %v800 = vadd.f32 0.0, %v799
        %v801 = vpop.f32.mrf.mxu0
        %v802 = vadd.f32 0.0, %v801
        %803 = vmatmul.bf16.gmra.mxu0 %v738
        %v804 = vpop.f32.mrf.mxu0
        %v805 = vadd.f32 0.0, %v804
        %v806 = vpop.f32.mrf.mxu0
        %v807 = vadd.f32 0.0, %v806
        %808 = vmatmul.bf16.gmra.mxu0 %v741
        %v809 = vpop.f32.mrf.mxu0
        %v810 = vadd.f32 0.0, %v809
        %v811 = vpop.f32.mrf.mxu0
        %v812 = vadd.f32 0.0, %v811
        %813 = vmatmul.bf16.gmra.mxu0 %v744
        %v814 = vpop.f32.mrf.mxu0
        %v815 = vadd.f32 0.0, %v814
        %v816 = vpop.f32.mrf.mxu0
        %v817 = vadd.f32 0.0, %v816
        %818 = vmatmul.bf16.gmra.mxu0 %v747
        %v819 = vpop.f32.mrf.mxu0
        %v820 = vadd.f32 0.0, %v819
        %v821 = vpop.f32.mrf.mxu0
        %v822 = vadd.f32 0.0, %v821
        %823 = vmatmul.bf16.gmra.mxu0 %v750
        %v824 = vpop.f32.mrf.mxu0
        %v825 = vadd.f32 0.0, %v824
        %v826 = vpop.f32.mrf.mxu0
        %v827 = vadd.f32 0.0, %v826
        %828 = vmatmul.bf16.gmra.mxu0 %v753
        %v829 = vpop.f32.mrf.mxu0
        %v830 = vadd.f32 0.0, %v829
        %v831 = vpop.f32.mrf.mxu0
        %v832 = vadd.f32 0.0, %v831
        %833 = vmatmul.bf16.gmra.mxu0 %v756
        %v834 = vpop.f32.mrf.mxu0
        %v835 = vadd.f32 0.0, %v834
        %v836 = vpop.f32.mrf.mxu0
        %v837 = vadd.f32 0.0, %v836
        %838 = vmatmul.bf16.gmra.mxu0 %v759
        %v839 = vpop.f32.mrf.mxu0
        %v840 = vadd.f32 0.0, %v839
        %v841 = vpop.f32.mrf.mxu0
        %v842 = vadd.f32 0.0, %v841
        %843 = vmatmul.bf16.gmra.mxu0 %v762
        %v844 = vpop.f32.mrf.mxu0
        %v845 = vadd.f32 0.0, %v844
        %v846 = vpop.f32.mrf.mxu0
        %v847 = vadd.f32 0.0, %v846
        %848 = vmatmul.bf16.gmra.mxu0 %v765
        %v849 = vpop.f32.mrf.mxu0
        %v850 = vadd.f32 0.0, %v849
        %v851 = vpop.f32.mrf.mxu0
        %v852 = vadd.f32 0.0, %v851
        %853 = vmatmul.bf16.gmra.mxu0 %v768
        %v854 = vpop.f32.mrf.mxu0
        %v855 = vadd.f32 0.0, %v854
        %v856 = vpop.f32.mrf.mxu0
        %v857 = vadd.f32 0.0, %v856
        %858 = vdwg.mxu0
        %859 = vmatpush.bf16.msra.mxu0 0
        %860 = vmatpush.bf16.msra.mxu0 0
        %861 = vmatpush.bf16.msra.mxu0 0
        %862 = vmatpush.bf16.msra.mxu0 0
        %863 = vmatpush.bf16.msra.mxu0 0
        %864 = vmatpush.bf16.msra.mxu0 0
        %865 = vmatpush.bf16.msra.mxu0 0
        %866 = vmatpush.bf16.msra.mxu0 %v720
        %867 = vmatmul.bf16.gmra.mxu0 %v723
        %v868 = vpop.f32.mrf.mxu0
        %v869 = vadd.f32 0.0, %v868
        %v870 = vpop.f32.mrf.mxu0
        %v871 = vadd.f32 0.0, %v870
        %872 = vmatmul.bf16.gmra.mxu0 %v726
        %v873 = vpop.f32.mrf.mxu0
        %v874 = vadd.f32 0.0, %v873
        %v875 = vpop.f32.mrf.mxu0
        %v876 = vadd.f32 0.0, %v875
        %877 = vmatmul.bf16.gmra.mxu0 %v729
        %v878 = vpop.f32.mrf.mxu0
        %v879 = vadd.f32 0.0, %v878
        %v880 = vpop.f32.mrf.mxu0
        %v881 = vadd.f32 0.0, %v880
        %882 = vmatmul.bf16.gmra.mxu0 %v732
        %v883 = vpop.f32.mrf.mxu0
        %v884 = vadd.f32 0.0, %v883
        %v885 = vpop.f32.mrf.mxu0
        %v886 = vadd.f32 0.0, %v885
        %887 = vmatmul.bf16.gmra.mxu0 %v735
        %v888 = vpop.f32.mrf.mxu0
        %v889 = vadd.f32 0.0, %v888
        %v890 = vpop.f32.mrf.mxu0
        %v891 = vadd.f32 0.0, %v890
        %892 = vmatmul.bf16.gmra.mxu0 %v738
        %v893 = vpop.f32.mrf.mxu0
        %v894 = vadd.f32 0.0, %v893
        %v895 = vpop.f32.mrf.mxu0
        %v896 = vadd.f32 0.0, %v895
        %897 = vmatmul.bf16.gmra.mxu0 %v741
        %v898 = vpop.f32.mrf.mxu0
        %v899 = vadd.f32 0.0, %v898
        %v900 = vpop.f32.mrf.mxu0
        %v901 = vadd.f32 0.0, %v900
        %902 = vmatmul.bf16.gmra.mxu0 %v744
        %v903 = vpop.f32.mrf.mxu0
        %v904 = vadd.f32 0.0, %v903
        %v905 = vpop.f32.mrf.mxu0
        %v906 = vadd.f32 0.0, %v905
        %907 = vmatmul.bf16.gmra.mxu0 %v747
        %v908 = vpop.f32.mrf.mxu0
        %v909 = vadd.f32 0.0, %v908
        %v910 = vpop.f32.mrf.mxu0
        %v911 = vadd.f32 0.0, %v910
        %912 = vmatmul.bf16.gmra.mxu0 %v750
        %v913 = vpop.f32.mrf.mxu0
        %v914 = vadd.f32 0.0, %v913
        %v915 = vpop.f32.mrf.mxu0
        %v916 = vadd.f32 0.0, %v915
        %917 = vmatmul.bf16.gmra.mxu0 %v753
        %v918 = vpop.f32.mrf.mxu0
        %v919 = vadd.f32 0.0, %v918
        %v920 = vpop.f32.mrf.mxu0
        %v921 = vadd.f32 0.0, %v920
        %922 = vmatmul.bf16.gmra.mxu0 %v756
        %v923 = vpop.f32.mrf.mxu0
        %v924 = vadd.f32 0.0, %v923
        %v925 = vpop.f32.mrf.mxu0
        %v926 = vadd.f32 0.0, %v925
        %927 = vmatmul.bf16.gmra.mxu0 %v759
        %v928 = vpop.f32.mrf.mxu0
        %v929 = vadd.f32 0.0, %v928
        %v930 = vpop.f32.mrf.mxu0
        %v931 = vadd.f32 0.0, %v930
        %932 = vmatmul.bf16.gmra.mxu0 %v762
        %v933 = vpop.f32.mrf.mxu0
        %v934 = vadd.f32 0.0, %v933
        %v935 = vpop.f32.mrf.mxu0
        %v936 = vadd.f32 0.0, %v935
        %937 = vmatmul.bf16.gmra.mxu0 %v765
        %v938 = vpop.f32.mrf.mxu0
        %v939 = vadd.f32 0.0, %v938
        %v940 = vpop.f32.mrf.mxu0
        %v941 = vadd.f32 0.0, %v940
        %942 = vmatmul.bf16.gmra.mxu0 %v768
        %v943 = vpop.f32.mrf.mxu0
        %v944 = vadd.f32 0.0, %v943
        %v945 = vpop.f32.mrf.mxu0
        %v946 = vadd.f32 0.0, %v945
        %947 = vdwg.mxu0
        %v948 = vmax.f32 %v780, %v869
        %949 = vmax.xlane.f32.xlu0 %v948
        %v950 = vpop.xlane.xlu0 %949
        %v951 = vmax.f32 %v782, %v871
        %952 = vmax.xlane.f32.xlu0 %v951
        %v953 = vpop.xlane.xlu0 %952
        %v954 = vmax.f32 %v785, %v874
        %955 = vmax.xlane.f32.xlu0 %v954
        %v956 = vpop.xlane.xlu0 %955
        %v957 = vmax.f32 %v787, %v876
        %958 = vmax.xlane.f32.xlu0 %v957
        %v959 = vpop.xlane.xlu0 %958
        %v960 = vmax.f32 %v790, %v879
        %961 = vmax.xlane.f32.xlu0 %v960
        %v962 = vpop.xlane.xlu0 %961
        %v963 = vmax.f32 %v792, %v881
        %964 = vmax.xlane.f32.xlu0 %v963
        %v965 = vpop.xlane.xlu0 %964
        %v966 = vmax.f32 %v795, %v884
        %967 = vmax.xlane.f32.xlu0 %v966
        %v968 = vpop.xlane.xlu0 %967
        %v969 = vmax.f32 %v797, %v886
        %970 = vmax.xlane.f32.xlu0 %v969
        %v971 = vpop.xlane.xlu0 %970
        %v972 = vmax.f32 %v800, %v889
        %973 = vmax.xlane.f32.xlu0 %v972
        %v974 = vpop.xlane.xlu0 %973
        %v975 = vmax.f32 %v802, %v891
        %976 = vmax.xlane.f32.xlu0 %v975
        %v977 = vpop.xlane.xlu0 %976
        %v978 = vmax.f32 %v805, %v894
        %979 = vmax.xlane.f32.xlu0 %v978
        %v980 = vpop.xlane.xlu0 %979
        %v981 = vmax.f32 %v807, %v896
        %982 = vmax.xlane.f32.xlu0 %v981
        %v983 = vpop.xlane.xlu0 %982
        %v984 = vmax.f32 %v810, %v899
        %985 = vmax.xlane.f32.xlu0 %v984
        %v986 = vpop.xlane.xlu0 %985
        %v987 = vmax.f32 %v812, %v901
        %988 = vmax.xlane.f32.xlu0 %v987
        %v989 = vpop.xlane.xlu0 %988
        %v990 = vmax.f32 %v815, %v904
        %991 = vmax.xlane.f32.xlu0 %v990
        %v992 = vpop.xlane.xlu0 %991
        %v993 = vmax.f32 %v817, %v906
        %994 = vmax.xlane.f32.xlu0 %v993
        %v995 = vpop.xlane.xlu0 %994
        %v996 = vmax.f32 %v820, %v909
        %997 = vmax.xlane.f32.xlu0 %v996
        %v998 = vpop.xlane.xlu0 %997
        %v999 = vmax.f32 %v822, %v911
        %1000 = vmax.xlane.f32.xlu0 %v999
        %v1001 = vpop.xlane.xlu0 %1000
        %v1002 = vmax.f32 %v825, %v914
        %1003 = vmax.xlane.f32.xlu0 %v1002
        %v1004 = vpop.xlane.xlu0 %1003
        %v1005 = vmax.f32 %v827, %v916
        %1006 = vmax.xlane.f32.xlu0 %v1005
        %v1007 = vpop.xlane.xlu0 %1006
        %v1008 = vmax.f32 %v830, %v919
        %1009 = vmax.xlane.f32.xlu0 %v1008
        %v1010 = vpop.xlane.xlu0 %1009
        %v1011 = vmax.f32 %v832, %v921
        %1012 = vmax.xlane.f32.xlu0 %v1011
        %v1013 = vpop.xlane.xlu0 %1012
        %v1014 = vmax.f32 %v835, %v924
        %1015 = vmax.xlane.f32.xlu0 %v1014
        %v1016 = vpop.xlane.xlu0 %1015
        %v1017 = vmax.f32 %v837, %v926
        %1018 = vmax.xlane.f32.xlu0 %v1017
        %v1019 = vpop.xlane.xlu0 %1018
        %v1020 = vmax.f32 %v840, %v929
        %1021 = vmax.xlane.f32.xlu0 %v1020
        %v1022 = vpop.xlane.xlu0 %1021
        %v1023 = vmax.f32 %v842, %v931
        %1024 = vmax.xlane.f32.xlu0 %v1023
        %v1025 = vpop.xlane.xlu0 %1024
        %v1026 = vmax.f32 %v845, %v934
        %1027 = vmax.xlane.f32.xlu0 %v1026
        %v1028 = vpop.xlane.xlu0 %1027
        %v1029 = vmax.f32 %v847, %v936
        %1030 = vmax.xlane.f32.xlu0 %v1029
        %v1031 = vpop.xlane.xlu0 %1030
        %v1032 = vmax.f32 %v850, %v939
        %1033 = vmax.xlane.f32.xlu0 %v1032
        %v1034 = vpop.xlane.xlu0 %1033
        %v1035 = vmax.f32 %v852, %v941
        %1036 = vmax.xlane.f32.xlu0 %v1035
        %v1037 = vpop.xlane.xlu0 %1036
        %v1038 = vmax.f32 %v855, %v944
        %1039 = vmax.xlane.f32.xlu0 %v1038
        %v1040 = vpop.xlane.xlu0 %1039
        %v1041 = vmax.f32 %v857, %v946
        %1042 = vmax.xlane.f32.xlu0 %v1041
        %v1043 = vpop.xlane.xlu0 %1042
        %v1044 = vsub.f32 %v780, %v950
        %v1045 = vsub.f32 %v869, %v950
        %v1046 = vsub.f32 %v782, %v953
        %v1047 = vsub.f32 %v871, %v953
        %v1048 = vsub.f32 %v785, %v956
        %v1049 = vsub.f32 %v874, %v956
        %v1050 = vsub.f32 %v787, %v959
        %v1051 = vsub.f32 %v876, %v959
        %v1052 = vsub.f32 %v790, %v962
        %v1053 = vsub.f32 %v879, %v962
        %v1054 = vsub.f32 %v792, %v965
        %v1055 = vsub.f32 %v881, %v965
        %v1056 = vsub.f32 %v795, %v968
        %v1057 = vsub.f32 %v884, %v968
        %v1058 = vsub.f32 %v797, %v971
        %v1059 = vsub.f32 %v886, %v971
        %v1060 = vsub.f32 %v800, %v974
        %v1061 = vsub.f32 %v889, %v974
        %v1062 = vsub.f32 %v802, %v977
        %v1063 = vsub.f32 %v891, %v977
        %v1064 = vsub.f32 %v805, %v980
        %v1065 = vsub.f32 %v894, %v980
        %v1066 = vsub.f32 %v807, %v983
        %v1067 = vsub.f32 %v896, %v983
        %v1068 = vsub.f32 %v810, %v986
        %v1069 = vsub.f32 %v899, %v986
        %v1070 = vsub.f32 %v812, %v989
        %v1071 = vsub.f32 %v901, %v989
        %v1072 = vsub.f32 %v815, %v992
        %v1073 = vsub.f32 %v904, %v992
        %v1074 = vsub.f32 %v817, %v995
        %v1075 = vsub.f32 %v906, %v995
        %v1076 = vsub.f32 %v820, %v998
        %v1077 = vsub.f32 %v909, %v998
        %v1078 = vsub.f32 %v822, %v1001
        %v1079 = vsub.f32 %v911, %v1001
        %v1080 = vsub.f32 %v825, %v1004
        %v1081 = vsub.f32 %v914, %v1004
        %v1082 = vsub.f32 %v827, %v1007
        %v1083 = vsub.f32 %v916, %v1007
        %v1084 = vsub.f32 %v830, %v1010
        %v1085 = vsub.f32 %v919, %v1010
        %v1086 = vsub.f32 %v832, %v1013
        %v1087 = vsub.f32 %v921, %v1013
        %v1088 = vsub.f32 %v835, %v1016
        %v1089 = vsub.f32 %v924, %v1016
        %v1090 = vsub.f32 %v837, %v1019
        %v1091 = vsub.f32 %v926, %v1019
        %v1092 = vsub.f32 %v840, %v1022
        %v1093 = vsub.f32 %v929, %v1022
        %v1094 = vsub.f32 %v842, %v1025
        %v1095 = vsub.f32 %v931, %v1025
        %v1096 = vsub.f32 %v845, %v1028
        %v1097 = vsub.f32 %v934, %v1028
        %v1098 = vsub.f32 %v847, %v1031
        %v1099 = vsub.f32 %v936, %v1031
        %v1100 = vsub.f32 %v850, %v1034
        %v1101 = vsub.f32 %v939, %v1034
        %v1102 = vsub.f32 %v852, %v1037
        %v1103 = vsub.f32 %v941, %v1037
        %v1104 = vsub.f32 %v855, %v1040
        %v1105 = vsub.f32 %v944, %v1040
        %v1106 = vsub.f32 %v857, %v1043
        %v1107 = vsub.f32 %v946, %v1043
        %v1108 = vmul.f32 %v1044, 1.442695
        %v1109 = vpow.pop %v1108
        %v1110 = vmul.f32 %v1045, 1.442695
        %v1111 = vpow.pop %v1110
        %v1112 = vmul.f32 %v1046, 1.442695
        %v1113 = vpow.pop %v1112
        %v1114 = vmul.f32 %v1047, 1.442695
        %v1115 = vpow.pop %v1114
        %v1116 = vmul.f32 %v1048, 1.442695
        %v1117 = vpow.pop %v1116
        %v1118 = vmul.f32 %v1049, 1.442695
        %v1119 = vpow.pop %v1118
        %v1120 = vmul.f32 %v1050, 1.442695
        %v1121 = vpow.pop %v1120
        %v1122 = vmul.f32 %v1051, 1.442695
        %v1123 = vpow.pop %v1122
        %v1124 = vmul.f32 %v1052, 1.442695
        %v1125 = vpow.pop %v1124
        %v1126 = vmul.f32 %v1053, 1.442695
        %v1127 = vpow.pop %v1126
        %v1128 = vmul.f32 %v1054, 1.442695
        %v1129 = vpow.pop %v1128
        %v1130 = vmul.f32 %v1055, 1.442695
        %v1131 = vpow.pop %v1130
        %v1132 = vmul.f32 %v1056, 1.442695
        %v1133 = vpow.pop %v1132
        %v1134 = vmul.f32 %v1057, 1.442695
        %v1135 = vpow.pop %v1134
        %v1136 = vmul.f32 %v1058, 1.442695
        %v1137 = vpow.pop %v1136
        %v1138 = vmul.f32 %v1059, 1.442695
        %v1139 = vpow.pop %v1138
        %v1140 = vmul.f32 %v1060, 1.442695
        %v1141 = vpow.pop %v1140
        %v1142 = vmul.f32 %v1061, 1.442695
        %v1143 = vpow.pop %v1142
        %v1144 = vmul.f32 %v1062, 1.442695
        %v1145 = vpow.pop %v1144
        %v1146 = vmul.f32 %v1063, 1.442695
        %v1147 = vpow.pop %v1146
        %v1148 = vmul.f32 %v1064, 1.442695
        %v1149 = vpow.pop %v1148
        %v1150 = vmul.f32 %v1065, 1.442695
        %v1151 = vpow.pop %v1150
        %v1152 = vmul.f32 %v1066, 1.442695
        %v1153 = vpow.pop %v1152
        %v1154 = vmul.f32 %v1067, 1.442695
        %v1155 = vpow.pop %v1154
        %v1156 = vmul.f32 %v1068, 1.442695
        %v1157 = vpow.pop %v1156
        %v1158 = vmul.f32 %v1069, 1.442695
        %v1159 = vpow.pop %v1158
        %v1160 = vmul.f32 %v1070, 1.442695
        %v1161 = vpow.pop %v1160
        %v1162 = vmul.f32 %v1071, 1.442695
        %v1163 = vpow.pop %v1162
        %v1164 = vmul.f32 %v1072, 1.442695
        %v1165 = vpow.pop %v1164
        %v1166 = vmul.f32 %v1073, 1.442695
        %v1167 = vpow.pop %v1166
        %v1168 = vmul.f32 %v1074, 1.442695
        %v1169 = vpow.pop %v1168
        %v1170 = vmul.f32 %v1075, 1.442695
        %v1171 = vpow.pop %v1170
        %v1172 = vmul.f32 %v1076, 1.442695
        %v1173 = vpow.pop %v1172
        %v1174 = vmul.f32 %v1077, 1.442695
        %v1175 = vpow.pop %v1174
        %v1176 = vmul.f32 %v1078, 1.442695
        %v1177 = vpow.pop %v1176
        %v1178 = vmul.f32 %v1079, 1.442695
        %v1179 = vpow.pop %v1178
        %v1180 = vmul.f32 %v1080, 1.442695
        %v1181 = vpow.pop %v1180
        %v1182 = vmul.f32 %v1081, 1.442695
        %v1183 = vpow.pop %v1182
        %v1184 = vmul.f32 %v1082, 1.442695
        %v1185 = vpow.pop %v1184
        %v1186 = vmul.f32 %v1083, 1.442695
        %v1187 = vpow.pop %v1186
        %v1188 = vmul.f32 %v1084, 1.442695
        %v1189 = vpow.pop %v1188
        %v1190 = vmul.f32 %v1085, 1.442695
        %v1191 = vpow.pop %v1190
        %v1192 = vmul.f32 %v1086, 1.442695
        %v1193 = vpow.pop %v1192
        %v1194 = vmul.f32 %v1087, 1.442695
        %v1195 = vpow.pop %v1194
        %v1196 = vmul.f32 %v1088, 1.442695
        %v1197 = vpow.pop %v1196
        %v1198 = vmul.f32 %v1089, 1.442695
        %v1199 = vpow.pop %v1198
        %v1200 = vmul.f32 %v1090, 1.442695
        %v1201 = vpow.pop %v1200
        %v1202 = vmul.f32 %v1091, 1.442695
        %v1203 = vpow.pop %v1202
        %v1204 = vmul.f32 %v1092, 1.442695
        %v1205 = vpow.pop %v1204
        %v1206 = vmul.f32 %v1093, 1.442695
        %v1207 = vpow.pop %v1206
        %v1208 = vmul.f32 %v1094, 1.442695
        %v1209 = vpow.pop %v1208
        %v1210 = vmul.f32 %v1095, 1.442695
        %v1211 = vpow.pop %v1210
        %v1212 = vmul.f32 %v1096, 1.442695
        %v1213 = vpow.pop %v1212
        %v1214 = vmul.f32 %v1097, 1.442695
        %v1215 = vpow.pop %v1214
        %v1216 = vmul.f32 %v1098, 1.442695
        %v1217 = vpow.pop %v1216
        %v1218 = vmul.f32 %v1099, 1.442695
        %v1219 = vpow.pop %v1218
        %v1220 = vmul.f32 %v1100, 1.442695
        %v1221 = vpow.pop %v1220
        %v1222 = vmul.f32 %v1101, 1.442695
        %v1223 = vpow.pop %v1222
        %v1224 = vmul.f32 %v1102, 1.442695
        %v1225 = vpow.pop %v1224
        %v1226 = vmul.f32 %v1103, 1.442695
        %v1227 = vpow.pop %v1226
        %v1228 = vmul.f32 %v1104, 1.442695
        %v1229 = vpow.pop %v1228
        %v1230 = vmul.f32 %v1105, 1.442695
        %v1231 = vpow.pop %v1230
        %v1232 = vmul.f32 %v1106, 1.442695
        %v1233 = vpow.pop %v1232
        %v1234 = vmul.f32 %v1107, 1.442695
        %v1235 = vpow.pop %v1234
        %v1236 = vadd.f32 %v1109, %v1111
        %1237 = vadd.xlane.f32.xlu0 %v1236
        %v1238 = vpop.xlane.xlu0 %1237
        %v1239 = vadd.f32 %v1113, %v1115
        %1240 = vadd.xlane.f32.xlu0 %v1239
        %v1241 = vpop.xlane.xlu0 %1240
        %v1242 = vadd.f32 %v1117, %v1119
        %1243 = vadd.xlane.f32.xlu0 %v1242
        %v1244 = vpop.xlane.xlu0 %1243
        %v1245 = vadd.f32 %v1121, %v1123
        %1246 = vadd.xlane.f32.xlu0 %v1245
        %v1247 = vpop.xlane.xlu0 %1246
        %v1248 = vadd.f32 %v1125, %v1127
        %1249 = vadd.xlane.f32.xlu0 %v1248
        %v1250 = vpop.xlane.xlu0 %1249
        %v1251 = vadd.f32 %v1129, %v1131
        %1252 = vadd.xlane.f32.xlu0 %v1251
        %v1253 = vpop.xlane.xlu0 %1252
        %v1254 = vadd.f32 %v1133, %v1135
        %1255 = vadd.xlane.f32.xlu0 %v1254
        %v1256 = vpop.xlane.xlu0 %1255
        %v1257 = vadd.f32 %v1137, %v1139
        %1258 = vadd.xlane.f32.xlu0 %v1257
        %v1259 = vpop.xlane.xlu0 %1258
        %v1260 = vadd.f32 %v1141, %v1143
        %1261 = vadd.xlane.f32.xlu0 %v1260
        %v1262 = vpop.xlane.xlu0 %1261
        %v1263 = vadd.f32 %v1145, %v1147
        %1264 = vadd.xlane.f32.xlu0 %v1263
        %v1265 = vpop.xlane.xlu0 %1264
        %v1266 = vadd.f32 %v1149, %v1151
        %1267 = vadd.xlane.f32.xlu0 %v1266
        %v1268 = vpop.xlane.xlu0 %1267
        %v1269 = vadd.f32 %v1153, %v1155
        %1270 = vadd.xlane.f32.xlu0 %v1269
        %v1271 = vpop.xlane.xlu0 %1270
        %v1272 = vadd.f32 %v1157, %v1159
        %1273 = vadd.xlane.f32.xlu0 %v1272
        %v1274 = vpop.xlane.xlu0 %1273
        %v1275 = vadd.f32 %v1161, %v1163
        %1276 = vadd.xlane.f32.xlu0 %v1275
        %v1277 = vpop.xlane.xlu0 %1276
        %v1278 = vadd.f32 %v1165, %v1167
        %1279 = vadd.xlane.f32.xlu0 %v1278
        %v1280 = vpop.xlane.xlu0 %1279
        %v1281 = vadd.f32 %v1169, %v1171
        %1282 = vadd.xlane.f32.xlu0 %v1281
        %v1283 = vpop.xlane.xlu0 %1282
        %v1284 = vadd.f32 %v1173, %v1175
        %1285 = vadd.xlane.f32.xlu0 %v1284
        %v1286 = vpop.xlane.xlu0 %1285
        %v1287 = vadd.f32 %v1177, %v1179
        %1288 = vadd.xlane.f32.xlu0 %v1287
        %v1289 = vpop.xlane.xlu0 %1288
        %v1290 = vadd.f32 %v1181, %v1183
        %1291 = vadd.xlane.f32.xlu0 %v1290
        %v1292 = vpop.xlane.xlu0 %1291
        %v1293 = vadd.f32 %v1185, %v1187
        %1294 = vadd.xlane.f32.xlu0 %v1293
        %v1295 = vpop.xlane.xlu0 %1294
        %v1296 = vadd.f32 %v1189, %v1191
        %1297 = vadd.xlane.f32.xlu0 %v1296
        %v1298 = vpop.xlane.xlu0 %1297
        %v1299 = vadd.f32 %v1193, %v1195
        %1300 = vadd.xlane.f32.xlu0 %v1299
        %v1301 = vpop.xlane.xlu0 %1300
        %v1302 = vadd.f32 %v1197, %v1199
        %1303 = vadd.xlane.f32.xlu0 %v1302
        %v1304 = vpop.xlane.xlu0 %1303
        %v1305 = vadd.f32 %v1201, %v1203
        %1306 = vadd.xlane.f32.xlu0 %v1305
        %v1307 = vpop.xlane.xlu0 %1306
        %v1308 = vadd.f32 %v1205, %v1207
        %1309 = vadd.xlane.f32.xlu0 %v1308
        %v1310 = vpop.xlane.xlu0 %1309
        %v1311 = vadd.f32 %v1209, %v1211
        %1312 = vadd.xlane.f32.xlu0 %v1311
        %v1313 = vpop.xlane.xlu0 %1312
        %v1314 = vadd.f32 %v1213, %v1215
        %1315 = vadd.xlane.f32.xlu0 %v1314
        %v1316 = vpop.xlane.xlu0 %1315
        %v1317 = vadd.f32 %v1217, %v1219
        %1318 = vadd.xlane.f32.xlu0 %v1317
        %v1319 = vpop.xlane.xlu0 %1318
        %v1320 = vadd.f32 %v1221, %v1223
        %1321 = vadd.xlane.f32.xlu0 %v1320
        %v1322 = vpop.xlane.xlu0 %1321
        %v1323 = vadd.f32 %v1225, %v1227
        %1324 = vadd.xlane.f32.xlu0 %v1323
        %v1325 = vpop.xlane.xlu0 %1324
        %v1326 = vadd.f32 %v1229, %v1231
        %1327 = vadd.xlane.f32.xlu0 %v1326
        %v1328 = vpop.xlane.xlu0 %1327
        %v1329 = vadd.f32 %v1233, %v1235
        %1330 = vadd.xlane.f32.xlu0 %v1329
        %v1331 = vpop.xlane.xlu0 %1330
        %1332 = vxpose.xlu0.b32.start [1/16] %v631, 128
        %1333 = vxpose.xlu0.b32.cont [2/16] %v633, 128
        %1334 = vxpose.xlu0.b32.cont [3/16] 0.0, 128
        %1335 = vxpose.xlu0.b32.cont [4/16] 0.0, 128
        %1336 = vxpose.xlu0.b32.cont [5/16] 0.0, 128
        %1337 = vxpose.xlu0.b32.cont [6/16] 0.0, 128
        %1338 = vxpose.xlu0.b32.cont [7/16] 0.0, 128
        %1339 = vxpose.xlu0.b32.cont [8/16] 0.0, 128
        %1340 = vxpose.xlu0.b32.cont [9/16] 0.0, 128
        %1341 = vxpose.xlu0.b32.cont [10/16] 0.0, 128
        %1342 = vxpose.xlu0.b32.cont [11/16] 0.0, 128
        %1343 = vxpose.xlu0.b32.cont [12/16] 0.0, 128
        %1344 = vxpose.xlu0.b32.cont [13/16] 0.0, 128
        %1345 = vxpose.xlu0.b32.cont [14/16] 0.0, 128
        %1346 = vxpose.xlu0.b32.cont [15/16] 0.0, 128
        %1347 = vxpose.xlu0.b32.end [16/16] 0.0, 128
        %v1348 = vpop.trf.xlu0
        %v1349 = vpop.trf.xlu0
        %v1350 = vpop.trf.xlu0
        %v1351 = vpop.trf.xlu0
        %v1352 = vpop.trf.xlu0
        %v1353 = vpop.trf.xlu0
        %v1354 = vpop.trf.xlu0
        %v1355 = vpop.trf.xlu0
        %v1356 = vpop.trf.xlu0
        %v1357 = vpop.trf.xlu0
        %v1358 = vpop.trf.xlu0
        %v1359 = vpop.trf.xlu0
        %v1360 = vpop.trf.xlu0
        %v1361 = vpop.trf.xlu0
        %v1362 = vpop.trf.xlu0
        %v1363 = vpop.trf.xlu0
        %1364 = vxpose.xlu0.b32.start [1/16] %v632, 128
        %1365 = vxpose.xlu0.b32.cont [2/16] %v634, 128
        %1366 = vxpose.xlu0.b32.cont [3/16] 0.0, 128
        %1367 = vxpose.xlu0.b32.cont [4/16] 0.0, 128
        %1368 = vxpose.xlu0.b32.cont [5/16] 0.0, 128
        %1369 = vxpose.xlu0.b32.cont [6/16] 0.0, 128
        %1370 = vxpose.xlu0.b32.cont [7/16] 0.0, 128
        %1371 = vxpose.xlu0.b32.cont [8/16] 0.0, 128
        %1372 = vxpose.xlu0.b32.cont [9/16] 0.0, 128
        %1373 = vxpose.xlu0.b32.cont [10/16] 0.0, 128
        %1374 = vxpose.xlu0.b32.cont [11/16] 0.0, 128
        %1375 = vxpose.xlu0.b32.cont [12/16] 0.0, 128
        %1376 = vxpose.xlu0.b32.cont [13/16] 0.0, 128
        %1377 = vxpose.xlu0.b32.cont [14/16] 0.0, 128
        %1378 = vxpose.xlu0.b32.cont [15/16] 0.0, 128
        %1379 = vxpose.xlu0.b32.end [16/16] 0.0, 128
        %v1380 = vpop.trf.xlu0
        %v1381 = vpop.trf.xlu0
        %v1382 = vpop.trf.xlu0
        %v1383 = vpop.trf.xlu0
        %v1384 = vpop.trf.xlu0
        %v1385 = vpop.trf.xlu0
        %v1386 = vpop.trf.xlu0
        %v1387 = vpop.trf.xlu0
        %v1388 = vpop.trf.xlu0
        %v1389 = vpop.trf.xlu0
        %v1390 = vpop.trf.xlu0
        %v1391 = vpop.trf.xlu0
        %v1392 = vpop.trf.xlu0
        %v1393 = vpop.trf.xlu0
        %v1394 = vpop.trf.xlu0
        %v1395 = vpop.trf.xlu0
        %v1396 = vpack.c.bf16 %v1349, %v1348
        %v1397 = vpack.c.bf16 %v1351, %v1350
        %v1398 = vpack.c.bf16 %v1353, %v1352
        %v1399 = vpack.c.bf16 %v1355, %v1354
        %v1400 = vpack.c.bf16 %v1357, %v1356
        %v1401 = vpack.c.bf16 %v1359, %v1358
        %v1402 = vpack.c.bf16 %v1361, %v1360
        %v1403 = vpack.c.bf16 %v1363, %v1362
        %v1404 = vpack.c.bf16 %v1381, %v1380
        %v1405 = vpack.c.bf16 %v1383, %v1382
        %v1406 = vpack.c.bf16 %v1385, %v1384
        %v1407 = vpack.c.bf16 %v1387, %v1386
        %v1408 = vpack.c.bf16 %v1389, %v1388
        %v1409 = vpack.c.bf16 %v1391, %v1390
        %v1410 = vpack.c.bf16 %v1393, %v1392
        %v1411 = vpack.c.bf16 %v1395, %v1394
        %v1412 = vpack.c.bf16 %v1113, %v1109
        %v1413 = vpack.c.bf16 %v1115, %v1111
        %v1414 = vpack.c.bf16 %v1121, %v1117
        %v1415 = vpack.c.bf16 %v1123, %v1119
        %v1416 = vpack.c.bf16 %v1129, %v1125
        %v1417 = vpack.c.bf16 %v1131, %v1127
        %v1418 = vpack.c.bf16 %v1137, %v1133
        %v1419 = vpack.c.bf16 %v1139, %v1135
        %v1420 = vpack.c.bf16 %v1145, %v1141
        %v1421 = vpack.c.bf16 %v1147, %v1143
        %v1422 = vpack.c.bf16 %v1153, %v1149
        %v1423 = vpack.c.bf16 %v1155, %v1151
        %v1424 = vpack.c.bf16 %v1161, %v1157
        %v1425 = vpack.c.bf16 %v1163, %v1159
        %v1426 = vpack.c.bf16 %v1169, %v1165
        %v1427 = vpack.c.bf16 %v1171, %v1167
        %v1428 = vpack.c.bf16 %v1177, %v1173
        %v1429 = vpack.c.bf16 %v1179, %v1175
        %v1430 = vpack.c.bf16 %v1185, %v1181
        %v1431 = vpack.c.bf16 %v1187, %v1183
        %v1432 = vpack.c.bf16 %v1193, %v1189
        %v1433 = vpack.c.bf16 %v1195, %v1191
        %v1434 = vpack.c.bf16 %v1201, %v1197
        %v1435 = vpack.c.bf16 %v1203, %v1199
        %v1436 = vpack.c.bf16 %v1209, %v1205
        %v1437 = vpack.c.bf16 %v1211, %v1207
        %v1438 = vpack.c.bf16 %v1217, %v1213
        %v1439 = vpack.c.bf16 %v1219, %v1215
        %v1440 = vpack.c.bf16 %v1225, %v1221
        %v1441 = vpack.c.bf16 %v1227, %v1223
        %v1442 = vpack.c.bf16 %v1233, %v1229
        %v1443 = vpack.c.bf16 %v1235, %v1231
        %1444 = vmatpush.bf16.msra.mxu0 %v1403
        %1445 = vmatpush.bf16.msra.mxu0 %v1402
        %1446 = vmatpush.bf16.msra.mxu0 %v1401
        %1447 = vmatpush.bf16.msra.mxu0 %v1400
        %1448 = vmatpush.bf16.msra.mxu0 %v1399
        %1449 = vmatpush.bf16.msra.mxu0 %v1398
        %1450 = vmatpush.bf16.msra.mxu0 %v1397
        %1451 = vmatpush.bf16.msra.mxu0 %v1396
        %1452 = vmatmul.bf16.gmra.mxu0 %v1412
        %v1453 = vpop.f32.mrf.mxu0
        %v1454 = vadd.f32 0.0, %v1453
        %v1455 = vpop.f32.mrf.mxu0
        %v1456 = vadd.f32 0.0, %v1455
        %1457 = vmatmul.bf16.gmra.mxu0 %v1414
        %v1458 = vpop.f32.mrf.mxu0
        %v1459 = vadd.f32 0.0, %v1458
        %v1460 = vpop.f32.mrf.mxu0
        %v1461 = vadd.f32 0.0, %v1460
        %1462 = vmatmul.bf16.gmra.mxu0 %v1416
        %v1463 = vpop.f32.mrf.mxu0
        %v1464 = vadd.f32 0.0, %v1463
        %v1465 = vpop.f32.mrf.mxu0
        %v1466 = vadd.f32 0.0, %v1465
        %1467 = vmatmul.bf16.gmra.mxu0 %v1418
        %v1468 = vpop.f32.mrf.mxu0
        %v1469 = vadd.f32 0.0, %v1468
        %v1470 = vpop.f32.mrf.mxu0
        %v1471 = vadd.f32 0.0, %v1470
        %1472 = vmatmul.bf16.gmra.mxu0 %v1420
        %v1473 = vpop.f32.mrf.mxu0
        %v1474 = vadd.f32 0.0, %v1473
        %v1475 = vpop.f32.mrf.mxu0
        %v1476 = vadd.f32 0.0, %v1475
        %1477 = vmatmul.bf16.gmra.mxu0 %v1422
        %v1478 = vpop.f32.mrf.mxu0
        %v1479 = vadd.f32 0.0, %v1478
        %v1480 = vpop.f32.mrf.mxu0
        %v1481 = vadd.f32 0.0, %v1480
        %1482 = vmatmul.bf16.gmra.mxu0 %v1424
        %v1483 = vpop.f32.mrf.mxu0
        %v1484 = vadd.f32 0.0, %v1483
        %v1485 = vpop.f32.mrf.mxu0
        %v1486 = vadd.f32 0.0, %v1485
        %1487 = vmatmul.bf16.gmra.mxu0 %v1426
        %v1488 = vpop.f32.mrf.mxu0
        %v1489 = vadd.f32 0.0, %v1488
        %v1490 = vpop.f32.mrf.mxu0
        %v1491 = vadd.f32 0.0, %v1490
        %1492 = vmatmul.bf16.gmra.mxu0 %v1428
        %v1493 = vpop.f32.mrf.mxu0
        %v1494 = vadd.f32 0.0, %v1493
        %v1495 = vpop.f32.mrf.mxu0
        %v1496 = vadd.f32 0.0, %v1495
        %1497 = vmatmul.bf16.gmra.mxu0 %v1430
        %v1498 = vpop.f32.mrf.mxu0
        %v1499 = vadd.f32 0.0, %v1498
        %v1500 = vpop.f32.mrf.mxu0
        %v1501 = vadd.f32 0.0, %v1500
        %1502 = vmatmul.bf16.gmra.mxu0 %v1432
        %v1503 = vpop.f32.mrf.mxu0
        %v1504 = vadd.f32 0.0, %v1503
        %v1505 = vpop.f32.mrf.mxu0
        %v1506 = vadd.f32 0.0, %v1505
        %1507 = vmatmul.bf16.gmra.mxu0 %v1434
        %v1508 = vpop.f32.mrf.mxu0
        %v1509 = vadd.f32 0.0, %v1508
        %v1510 = vpop.f32.mrf.mxu0
        %v1511 = vadd.f32 0.0, %v1510
        %1512 = vmatmul.bf16.gmra.mxu0 %v1436
        %v1513 = vpop.f32.mrf.mxu0
        %v1514 = vadd.f32 0.0, %v1513
        %v1515 = vpop.f32.mrf.mxu0
        %v1516 = vadd.f32 0.0, %v1515
        %1517 = vmatmul.bf16.gmra.mxu0 %v1438
        %v1518 = vpop.f32.mrf.mxu0
        %v1519 = vadd.f32 0.0, %v1518
        %v1520 = vpop.f32.mrf.mxu0
        %v1521 = vadd.f32 0.0, %v1520
        %1522 = vmatmul.bf16.gmra.mxu0 %v1440
        %v1523 = vpop.f32.mrf.mxu0
        %v1524 = vadd.f32 0.0, %v1523
        %v1525 = vpop.f32.mrf.mxu0
        %v1526 = vadd.f32 0.0, %v1525
        %1527 = vmatmul.bf16.gmra.mxu0 %v1442
        %v1528 = vpop.f32.mrf.mxu0
        %v1529 = vadd.f32 0.0, %v1528
        %v1530 = vpop.f32.mrf.mxu0
        %v1531 = vadd.f32 0.0, %v1530
        %1532 = vdwg.mxu0
        %1533 = vmatpush.bf16.msra.mxu0 %v1411
        %1534 = vmatpush.bf16.msra.mxu0 %v1410
        %1535 = vmatpush.bf16.msra.mxu0 %v1409
        %1536 = vmatpush.bf16.msra.mxu0 %v1408
        %1537 = vmatpush.bf16.msra.mxu0 %v1407
        %1538 = vmatpush.bf16.msra.mxu0 %v1406
        %1539 = vmatpush.bf16.msra.mxu0 %v1405
        %1540 = vmatpush.bf16.msra.mxu0 %v1404
        %1541 = vmatmul.bf16.gmra.mxu0 %v1413
        %v1542 = vpop.f32.mrf.mxu0
        %v1543 = vadd.f32 %v1454, %v1542
        %v1544 = vpop.f32.mrf.mxu0
        %v1545 = vadd.f32 %v1456, %v1544
        %1546 = vmatmul.bf16.gmra.mxu0 %v1415
        %v1547 = vpop.f32.mrf.mxu0
        %v1548 = vadd.f32 %v1459, %v1547
        %v1549 = vpop.f32.mrf.mxu0
        %v1550 = vadd.f32 %v1461, %v1549
        %1551 = vmatmul.bf16.gmra.mxu0 %v1417
        %v1552 = vpop.f32.mrf.mxu0
        %v1553 = vadd.f32 %v1464, %v1552
        %v1554 = vpop.f32.mrf.mxu0
        %v1555 = vadd.f32 %v1466, %v1554
        %1556 = vmatmul.bf16.gmra.mxu0 %v1419
        %v1557 = vpop.f32.mrf.mxu0
        %v1558 = vadd.f32 %v1469, %v1557
        %v1559 = vpop.f32.mrf.mxu0
        %v1560 = vadd.f32 %v1471, %v1559
        %1561 = vmatmul.bf16.gmra.mxu0 %v1421
        %v1562 = vpop.f32.mrf.mxu0
        %v1563 = vadd.f32 %v1474, %v1562
        %v1564 = vpop.f32.mrf.mxu0
        %v1565 = vadd.f32 %v1476, %v1564
        %1566 = vmatmul.bf16.gmra.mxu0 %v1423
        %v1567 = vpop.f32.mrf.mxu0
        %v1568 = vadd.f32 %v1479, %v1567
        %v1569 = vpop.f32.mrf.mxu0
        %v1570 = vadd.f32 %v1481, %v1569
        %1571 = vmatmul.bf16.gmra.mxu0 %v1425
        %v1572 = vpop.f32.mrf.mxu0
        %v1573 = vadd.f32 %v1484, %v1572
        %v1574 = vpop.f32.mrf.mxu0
        %v1575 = vadd.f32 %v1486, %v1574
        %1576 = vmatmul.bf16.gmra.mxu0 %v1427
        %v1577 = vpop.f32.mrf.mxu0
        %v1578 = vadd.f32 %v1489, %v1577
        %v1579 = vpop.f32.mrf.mxu0
        %v1580 = vadd.f32 %v1491, %v1579
        %1581 = vmatmul.bf16.gmra.mxu0 %v1429
        %v1582 = vpop.f32.mrf.mxu0
        %v1583 = vadd.f32 %v1494, %v1582
        %v1584 = vpop.f32.mrf.mxu0
        %v1585 = vadd.f32 %v1496, %v1584
        %1586 = vmatmul.bf16.gmra.mxu0 %v1431
        %v1587 = vpop.f32.mrf.mxu0
        %v1588 = vadd.f32 %v1499, %v1587
        %v1589 = vpop.f32.mrf.mxu0
        %v1590 = vadd.f32 %v1501, %v1589
        %1591 = vmatmul.bf16.gmra.mxu0 %v1433
        %v1592 = vpop.f32.mrf.mxu0
        %v1593 = vadd.f32 %v1504, %v1592
        %v1594 = vpop.f32.mrf.mxu0
        %v1595 = vadd.f32 %v1506, %v1594
        %1596 = vmatmul.bf16.gmra.mxu0 %v1435
        %v1597 = vpop.f32.mrf.mxu0
        %v1598 = vadd.f32 %v1509, %v1597
        %v1599 = vpop.f32.mrf.mxu0
        %v1600 = vadd.f32 %v1511, %v1599
        %1601 = vmatmul.bf16.gmra.mxu0 %v1437
        %v1602 = vpop.f32.mrf.mxu0
        %v1603 = vadd.f32 %v1514, %v1602
        %v1604 = vpop.f32.mrf.mxu0
        %v1605 = vadd.f32 %v1516, %v1604
        %1606 = vmatmul.bf16.gmra.mxu0 %v1439
        %v1607 = vpop.f32.mrf.mxu0
        %v1608 = vadd.f32 %v1519, %v1607
        %v1609 = vpop.f32.mrf.mxu0
        %v1610 = vadd.f32 %v1521, %v1609
        %1611 = vmatmul.bf16.gmra.mxu0 %v1441
        %v1612 = vpop.f32.mrf.mxu0
        %v1613 = vadd.f32 %v1524, %v1612
        %v1614 = vpop.f32.mrf.mxu0
        %v1615 = vadd.f32 %v1526, %v1614
        %1616 = vmatmul.bf16.gmra.mxu0 %v1443
        %v1617 = vpop.f32.mrf.mxu0
        %v1618 = vadd.f32 %v1529, %v1617
        %v1619 = vpop.f32.mrf.mxu0
        %v1620 = vadd.f32 %v1531, %v1619
        %1621 = vdwg.mxu0
        %v1622 = vrcp.pop %v1238
        %v1623 = vrcp.pop %v1241
        %v1624 = vrcp.pop %v1244
        %v1625 = vrcp.pop %v1247
        %v1626 = vrcp.pop %v1250
        %v1627 = vrcp.pop %v1253
        %v1628 = vrcp.pop %v1256
        %v1629 = vrcp.pop %v1259
        %v1630 = vrcp.pop %v1262
        %v1631 = vrcp.pop %v1265
        %v1632 = vrcp.pop %v1268
        %v1633 = vrcp.pop %v1271
        %v1634 = vrcp.pop %v1274
        %v1635 = vrcp.pop %v1277
        %v1636 = vrcp.pop %v1280
        %v1637 = vrcp.pop %v1283
        %v1638 = vrcp.pop %v1286
        %v1639 = vrcp.pop %v1289
        %v1640 = vrcp.pop %v1292
        %v1641 = vrcp.pop %v1295
        %v1642 = vrcp.pop %v1298
        %v1643 = vrcp.pop %v1301
        %v1644 = vrcp.pop %v1304
        %v1645 = vrcp.pop %v1307
        %v1646 = vrcp.pop %v1310
        %v1647 = vrcp.pop %v1313
        %v1648 = vrcp.pop %v1316
        %v1649 = vrcp.pop %v1319
        %v1650 = vrcp.pop %v1322
        %v1651 = vrcp.pop %v1325
        %v1652 = vrcp.pop %v1328
        %v1653 = vrcp.pop %v1331
        %v1654 = vmul.f32 %v1543, %v1622
        %v1655 = vmul.f32 %v1545, %v1623
        %v1656 = vmul.f32 %v1548, %v1624
        %v1657 = vmul.f32 %v1550, %v1625
        %v1658 = vmul.f32 %v1553, %v1626
        %v1659 = vmul.f32 %v1555, %v1627
        %v1660 = vmul.f32 %v1558, %v1628
        %v1661 = vmul.f32 %v1560, %v1629
        %v1662 = vmul.f32 %v1563, %v1630
        %v1663 = vmul.f32 %v1565, %v1631
        %v1664 = vmul.f32 %v1568, %v1632
        %v1665 = vmul.f32 %v1570, %v1633
        %v1666 = vmul.f32 %v1573, %v1634
        %v1667 = vmul.f32 %v1575, %v1635
        %v1668 = vmul.f32 %v1578, %v1636
        %v1669 = vmul.f32 %v1580, %v1637
        %v1670 = vmul.f32 %v1583, %v1638
        %v1671 = vmul.f32 %v1585, %v1639
        %v1672 = vmul.f32 %v1588, %v1640
        %v1673 = vmul.f32 %v1590, %v1641
        %v1674 = vmul.f32 %v1593, %v1642
        %v1675 = vmul.f32 %v1595, %v1643
        %v1676 = vmul.f32 %v1598, %v1644
        %v1677 = vmul.f32 %v1600, %v1645
        %v1678 = vmul.f32 %v1603, %v1646
        %v1679 = vmul.f32 %v1605, %v1647
        %v1680 = vmul.f32 %v1608, %v1648
        %v1681 = vmul.f32 %v1610, %v1649
        %v1682 = vmul.f32 %v1613, %v1650
        %v1683 = vmul.f32 %v1615, %v1651
        %v1684 = vmul.f32 %v1618, %v1652
        %v1685 = vmul.f32 %v1620, %v1653
        %s1686 = smul.addr %s610, 8
        %s1687 = scalar_lea.vmem %s165, %s1686
        %v1688 = vld [vmem:[%s1687] sm:$0xff]
        %v1689 = vld [vmem:[%s1687 + $0x8] sm:$0xff]
        %v1690 = vld [vmem:[%s1687 + $0x10] sm:$0xff]
        %v1691 = vld [vmem:[%s1687 + $0x18] sm:$0xff]
        %1692 = vxpose.xlu0.b32.start [1/16] %v1654, 128
        %1693 = vxpose.xlu0.b32.cont [2/16] %v1655, 128
        %1694 = vxpose.xlu0.b32.cont [3/16] %v1656, 128
        %1695 = vxpose.xlu0.b32.cont [4/16] %v1657, 128
        %1696 = vxpose.xlu0.b32.cont [5/16] %v1658, 128
        %1697 = vxpose.xlu0.b32.cont [6/16] %v1659, 128
        %1698 = vxpose.xlu0.b32.cont [7/16] %v1660, 128
        %1699 = vxpose.xlu0.b32.cont [8/16] %v1661, 128
        %1700 = vxpose.xlu0.b32.cont [9/16] %v1662, 128
        %1701 = vxpose.xlu0.b32.cont [10/16] %v1663, 128
        %1702 = vxpose.xlu0.b32.cont [11/16] %v1664, 128
        %1703 = vxpose.xlu0.b32.cont [12/16] %v1665, 128
        %1704 = vxpose.xlu0.b32.cont [13/16] %v1666, 128
        %1705 = vxpose.xlu0.b32.cont [14/16] %v1667, 128
        %1706 = vxpose.xlu0.b32.cont [15/16] %v1668, 128
        %1707 = vxpose.xlu0.b32.end [16/16] %v1669, 128
        %v1708 = vpop.trf.xlu0
        %v1709 = vpop.trf.xlu0
        %v1710 = vpop.trf.xlu0
        %v1711 = vpop.trf.xlu0
        %v1712 = vpop.trf.xlu0
        %v1713 = vpop.trf.xlu0
        %v1714 = vpop.trf.xlu0
        %v1715 = vpop.trf.xlu0
        %v1716 = vpop.trf.xlu0
        %v1717 = vpop.trf.xlu0
        %v1718 = vpop.trf.xlu0
        %v1719 = vpop.trf.xlu0
        %v1720 = vpop.trf.xlu0
        %v1721 = vpop.trf.xlu0
        %v1722 = vpop.trf.xlu0
        %v1723 = vpop.trf.xlu0
        %1724 = vxpose.xlu0.b32.start [1/16] %v1670, 128
        %1725 = vxpose.xlu0.b32.cont [2/16] %v1671, 128
        %1726 = vxpose.xlu0.b32.cont [3/16] %v1672, 128
        %1727 = vxpose.xlu0.b32.cont [4/16] %v1673, 128
        %1728 = vxpose.xlu0.b32.cont [5/16] %v1674, 128
        %1729 = vxpose.xlu0.b32.cont [6/16] %v1675, 128
        %1730 = vxpose.xlu0.b32.cont [7/16] %v1676, 128
        %1731 = vxpose.xlu0.b32.cont [8/16] %v1677, 128
        %1732 = vxpose.xlu0.b32.cont [9/16] %v1678, 128
        %1733 = vxpose.xlu0.b32.cont [10/16] %v1679, 128
        %1734 = vxpose.xlu0.b32.cont [11/16] %v1680, 128
        %1735 = vxpose.xlu0.b32.cont [12/16] %v1681, 128
        %1736 = vxpose.xlu0.b32.cont [13/16] %v1682, 128
        %1737 = vxpose.xlu0.b32.cont [14/16] %v1683, 128
        %1738 = vxpose.xlu0.b32.cont [15/16] %v1684, 128
        %1739 = vxpose.xlu0.b32.end [16/16] %v1685, 128
        %v1740 = vpop.trf.xlu0
        %v1741 = vpop.trf.xlu0
        %v1742 = vpop.trf.xlu0
        %v1743 = vpop.trf.xlu0
        %v1744 = vpop.trf.xlu0
        %v1745 = vpop.trf.xlu0
        %v1746 = vpop.trf.xlu0
        %v1747 = vpop.trf.xlu0
        %v1748 = vpop.trf.xlu0
        %v1749 = vpop.trf.xlu0
        %v1750 = vpop.trf.xlu0
        %v1751 = vpop.trf.xlu0
        %v1752 = vpop.trf.xlu0
        %v1753 = vpop.trf.xlu0
        %v1754 = vpop.trf.xlu0
        %v1755 = vpop.trf.xlu0
        %v1756 = vadd.f32 %v1708, %v1688
        %v1757 = vadd.f32 %v1740, %v1689
        %v1758 = vadd.f32 %v1709, %v1690
        %v1759 = vadd.f32 %v1741, %v1691
        %s1760 = smul.addr %s610, 8
        %s1761 = scalar_lea.vmem %s170, %s1760
        %1762 = vst [vmem:[%s1761] sm:$0xff] %v1756
        %1763 = vst [vmem:[%s1761 + $0x8] sm:$0xff] %v1757
        %1764 = vst [vmem:[%s1761 + $0x10] sm:$0xff] %v1758
        %1765 = vst [vmem:[%s1761 + $0x18] sm:$0xff] %v1759
      $region37: #{attention_block_forward.1} parent=31 // loop_footer
        %s604 = sadd.s32 1, %s600
      $region38: #{attention_block_forward.1} parent=31 // loop_footer_branch
        %599 = sbr.rel target = $region34
      $region39: #{attention_block_forward.1} parent=31 // loop_exit
        _
      %p1766 = scmp.lt.s32.totalorder %s14, 1
      %s1767 = scalar_select %p1766, %s14, 1
      %s1768 = smul.addr %s1767, 16
      %s1769 = smul.addr %s1768, 8
      %s1770 = scalar_lea.vmem %s3, %s1769
      // Predicated region
      $region40: #{attention_block_forward.1} parent=31 // pred_check
        %p1771 = pneg %p100
      $region41: #{attention_block_forward.1} parent=31 // pred_check_branch
        %1773 = sbr.rel (%p1771) target = $region43
      $region42: #{attention_block_forward.1} parent=31 // pred_region
        _
      $region43: #{attention_block_forward.1} parent=31 // pred_fallthru
        _
    $region32: #{attention_block_forward.1} parent=5 // pred_fallthru
      _
    %p1774 = scmp.le.s32.totalorder 2, %s9
    // Predicated region
    $region44: #{attention_block_forward.1} parent=5 // pred_check
      %p1775 = pneg %p1774
    $region45: #{attention_block_forward.1} parent=5 // pred_check_branch
      %1777 = sbr.rel (%p1775) target = $region47
    $region46: #{attention_block_forward.1} parent=5 // pred_region
      %s1778 = ssub.s32 %s9, 2
      // Predicated region
      $region48: #{attention_block_forward.1} parent=46 // pred_check
        %p1779 = pneg %p106
      $region49: #{attention_block_forward.1} parent=46 // pred_check_branch
        %1781 = sbr.rel (%p1779) target = $region51
      $region50: #{attention_block_forward.1} parent=46 // pred_region
        %p1782 = scmp.lt.s32.totalorder %s15, 1
        %s1783 = scalar_select %p1782, %s15, 1
        %s1784 = smul.addr %s1783, 16
        %s1785 = smul.addr %s1784, 8
        %s1786 = scalar_lea.vmem %s3, %s1785
      $region51: #{attention_block_forward.1} parent=46 // pred_fallthru
        _
    $region47: #{attention_block_forward.1} parent=5 // pred_fallthru
      _
  $region6: #{attention_block_forward.1} parent=0 // loop_footer
    %s13 = sadd.s32 1, %s9
  $region7: #{attention_block_forward.1} parent=0 // loop_footer_branch
    %8 = sbr.rel target = $region3
  $region8: #{attention_block_forward.1} parent=0 // loop_exit
    _

</llo_original>
